<compile_context>
chip_gen: v5e
topology: v5e:2x2
jax: 0.10.0
libtpu: 0.0.40
codegen_flags: <defaults>
</compile_context>

<pallas_src>
import functools

import jax
import jax.numpy as jnp
from jax import lax
from jax.experimental import pallas as pl
from jax.experimental.pallas import tpu as pltpu

MU = 5.0       # module default mu=5
TILE = 128     # pairs per tile (MXU LHS rows: full 128x128 on v5e, half of 256x256 on v6e/v7x)


def _twin_loss_kernel(n_ptiles, n_ntiles, inv_p, inv_n, mu,
                      pt_ref, ps_ref, nt_ref, ns_ref, yn_ref, xS_ref, xT_ref,
                      out_ref):
    # pt/ps/nt/ns : VMEM int32 (num_pad, 1) pair-index columns (padded with -1)
    # yn_ref      : VMEM float32 (numN_pad, 1) (padded with 1.0)
    # xS_ref/xT_ref: VMEM (N, D) embedding tables
    # out_ref     : SMEM float32 (1,)
    N = xS_ref.shape[0]
    dt = xT_ref.dtype

    # Hoisted once: JAX does not CSE broadcast_in_dim inside the loops.
    col_iota = lax.broadcasted_iota(jnp.int32, (TILE, N), 1)

    def gather_rows(idx, table_ref):
        # idx: (TILE, 1) int32.  Padding (-1) / out-of-range indices produce an
        # all-zero one-hot row -> zero gathered row, no OOB read.
        onehot = (idx == col_iota).astype(dt)                       # (TILE, N) VPU
        return jnp.dot(onehot, table_ref[...],                      # (TILE, D) MXU
                       preferred_element_type=jnp.float32)

    def pair_sq_dist(t_idx_ref, s_idx_ref, base):
        t_rows = gather_rows(t_idx_ref[pl.ds(base, TILE), :], xT_ref)
        s_rows = gather_rows(s_idx_ref[pl.ds(base, TILE), :], xS_ref)
        d = t_rows - s_rows                                         # f32 (TILE, D)
        return jnp.sum(d * d, axis=1, keepdims=True)                # (TILE, 1) lane reduce

    # ---- positive pairs: lP = sum((xT[t] - xS[s])^2) / numP -----------------
    def pos_tile(i, acc):
        base = pl.multiple_of(i * TILE, TILE)
        return acc + pair_sq_dist(pt_ref, ps_ref, base)

    acc_p = lax.fori_loop(0, n_ptiles, pos_tile,
                          jnp.zeros((TILE, 1), jnp.float32),
                          unroll=(True if n_ptiles <= 4 else 4))

    # ---- negative pairs: (sum(lN*yN) + sum(relu(mu-lN)*(1-yN))) / numN ------
    def neg_tile(i, acc):
        base = pl.multiple_of(i * TILE, TILE)
        lN = pair_sq_dist(nt_ref, ns_ref, base)                     # (TILE, 1)
        y = yn_ref[pl.ds(base, TILE), :]                            # (TILE, 1)
        w = lN * y + jnp.maximum(mu - lN, 0.0) * (1.0 - y)
        return acc + w

    acc_n = lax.fori_loop(0, n_ntiles, neg_tile,
                          jnp.zeros((TILE, 1), jnp.float32),
                          unroll=(True if n_ntiles <= 4 else 4))

    out_ref[0] = jnp.sum(acc_p) * inv_p + jnp.sum(acc_n) * inv_n


def _pad_rows(x, multiple, fill):
    r = (-x.shape[0]) % multiple
    if r:
        pad = jnp.full((r,) + x.shape[1:], fill, dtype=x.dtype)
        x = jnp.concatenate([x, pad], axis=0)
    return x


def twin_loss(xS, xT, p_, n_, yN, mu=MU):
    """Returns a (1,) float32 array, matching the PyTorch module's output."""
    num_p = int(p_.shape[0])
    num_n = int(n_.shape[0])
    assert num_p > 0 and num_n > 0, "TwinLoss requires >=1 positive and negative pair"
    N, D = xS.shape

    # Pair-index columns for the one-hot gather; pad with -1 (zero one-hot row).
    p_t = _pad_rows(p_[:, 0:1].astype(jnp.int32), TILE, -1)
    p_s = _pad_rows(p_[:, 1:2].astype(jnp.int32), TILE, -1)
    n_t = _pad_rows(n_[:, 0:1].astype(jnp.int32), TILE, -1)
    n_s = _pad_rows(n_[:, 1:2].astype(jnp.int32), TILE, -1)
    # yN padded with 1.0 so padded (all-zero) negative pairs contribute 0.
    yn_col = _pad_rows(yN.astype(jnp.float32).reshape(-1, 1), TILE, 1.0)

    n_ptiles = p_t.shape[0] // TILE
    n_ntiles = n_t.shape[0] // TILE

    # Explicit VMEM budget: tables + one-hot intermediates + small pair columns.
    table_bytes = xS.size * xS.dtype.itemsize + xT.size * xT.dtype.itemsize
    aux_bytes = (4 * TILE * N * 4
                 + (p_t.size + p_s.size + n_t.size + n_s.size + yn_col.size) * 4)
    vmem_limit = int(min(128 << 20, max(32 << 20, table_bytes + aux_bytes + (8 << 20))))
    # TODO(synk): tables too large for VMEM (esp. v7x, 64 MiB physical) should
    # stay in HBM (memory_space=pl.ANY) with double-buffered per-tile row-DMA
    # gathers; likewise, very large pair counts should move the tile loop onto a
    # parallel grid axis to use both v7x TensorCores.

    kernel = pl.pallas_call(
        functools.partial(_twin_loss_kernel, n_ptiles, n_ntiles,
                          1.0 / num_p, 1.0 / num_n, float(mu)),
        out_shape=jax.ShapeDtypeStruct((1,), jnp.float32),
        in_specs=[
            pl.BlockSpec(memory_space=pltpu.MemorySpace.VMEM),   # p_t
            pl.BlockSpec(memory_space=pltpu.MemorySpace.VMEM),   # p_s
            pl.BlockSpec(memory_space=pltpu.MemorySpace.VMEM),   # n_t
            pl.BlockSpec(memory_space=pltpu.MemorySpace.VMEM),   # n_s
            pl.BlockSpec(memory_space=pltpu.MemorySpace.VMEM),   # yN column
            pl.BlockSpec(memory_space=pltpu.MemorySpace.VMEM),   # xS
            pl.BlockSpec(memory_space=pltpu.MemorySpace.VMEM),   # xT
        ],
        out_specs=pl.BlockSpec(memory_space=pltpu.MemorySpace.SMEM),
        compiler_params=pltpu.CompilerParams(vmem_limit_bytes=vmem_limit),
    )
    return kernel(p_t, p_s, n_t, n_s, yn_col, xS, xT)


def twin_loss_ref(xS, xT, p_, n_, yN, mu=MU):
    """Pure-JAX reference mirroring the PyTorch forward (with yN passed in)."""
    num_p = p_.shape[0]
    num_n = n_.shape[0]
    xS = xS.astype(jnp.float32)
    xT = xT.astype(jnp.float32)
    lP = jnp.sum((xT[p_[:, 0], :] - xS[p_[:, 1], :]) ** 2) / num_p
    lN = jnp.sum((xT[n_[:, 0], :] - xS[n_[:, 1], :]) ** 2, axis=1)
    lN1 = jnp.sum(lN * yN)
    lN2 = jnp.sum(jnp.maximum(mu - lN, 0.0) * (1.0 - yN))
    return (lP + (lN1 + lN2) / num_n).reshape(1)


if __name__ == "__main__":
    key = jax.random.PRNGKey(0)
    kS, kT, kP, kN, kY = jax.random.split(key, 5)

    N, D = 128, 256          # embedding rows / feature dim (lane-aligned)
    numP, numN = 12, 20      # deliberately NOT multiples of TILE (exercise padding)

    xS = jax.random.normal(kS, (N, D), dtype=jnp.float32)
    xT = jax.random.normal(kT, (N, D), dtype=jnp.float32)
    p_ = jax.random.randint(kP, (numP, 2), 0, N, dtype=jnp.int32)
    n_ = jax.random.randint(kN, (numN, 2), 0, N, dtype=jnp.int32)
    # torch.rand(...) * 0.2 in the original forward -> deterministic here.
    yN = 0.2 * jax.random.uniform(kY, (numN,), dtype=jnp.float32)

    out = jax.block_until_ready(twin_loss(xS, xT, p_, n_, yN))
    ref = jax.block_until_ready(twin_loss_ref(xS, xT, p_, n_, yN))

    assert out.shape == (1,) and out.dtype == jnp.float32
    assert jnp.allclose(out, ref, rtol=2e-5, atol=1e-3), (out, ref)
    print("KERNEL_OK")
</pallas_src>

<mosaic_0001>
module attributes {stable_mosaic.version = 11 : i64} {
  func.func @_twin_loss_kernel(%arg0: memref<128x1xi32, #tpu.memory_space<vmem>>, %arg1: memref<128x1xi32, #tpu.memory_space<vmem>>, %arg2: memref<128x1xi32, #tpu.memory_space<vmem>>, %arg3: memref<128x1xi32, #tpu.memory_space<vmem>>, %arg4: memref<128x1xf32, #tpu.memory_space<vmem>>, %arg5: memref<128x256xf32, #tpu.memory_space<vmem>>, %arg6: memref<128x256xf32, #tpu.memory_space<vmem>>, %arg7: memref<1xf32, #tpu.memory_space<smem>>) attributes {dimension_semantics = [], scalar_prefetch = 0 : i64, scratch_operands = 0 : i64, tpu.core_type = #tpu.core_type<tc>} {
    %0 = tpu.iota {dimensions = array<i32: 1>} : vector<128x128xi32>
    %cst = arith.constant 0.000000e+00 : f32
    %1 = vector.broadcast %cst : f32 to vector<128x1xf32>
    %c0_i32 = arith.constant 0 : i32
    %c128_i32 = arith.constant 128 : i32
    %2 = arith.muli %c0_i32, %c128_i32 : i32
    %3 = tpu.assume_multiple %2, 128 : i32
    %4 = arith.index_cast %3 : i32 to index
    %c0 = arith.constant 0 : index
    %5 = vector.load %arg0[%4, %c0] : memref<128x1xi32, #tpu.memory_space<vmem>>, vector<128x1xi32>
    %6 = vector.broadcast %5 : vector<128x1xi32> to vector<128x128xi32>
    %7 = arith.cmpi eq, %6, %0 : vector<128x128xi32>
    %8 = arith.extui %7 : vector<128x128xi1> to vector<128x128xi32>
    %9 = arith.sitofp %8 : vector<128x128xi32> to vector<128x128xf32>
    %c0_0 = arith.constant 0 : index
    %c0_1 = arith.constant 0 : index
    %10 = vector.load %arg6[%c0_0, %c0_1] : memref<128x256xf32, #tpu.memory_space<vmem>>, vector<128x256xf32>
    %cst_2 = arith.constant dense<0.000000e+00> : vector<128x256xf32>
    %11 = tpu.matmul %9, %10, %cst_2 {dimension_numbers = #tpu.dot_dimension_numbers<[1], [0], [0], [1], [0, 0, 1, 1], [], []>} : vector<128x128xf32>, vector<128x256xf32>, vector<128x256xf32> -> vector<128x256xf32>
    %12 = arith.index_cast %3 : i32 to index
    %c0_3 = arith.constant 0 : index
    %13 = vector.load %arg1[%12, %c0_3] : memref<128x1xi32, #tpu.memory_space<vmem>>, vector<128x1xi32>
    %14 = vector.broadcast %13 : vector<128x1xi32> to vector<128x128xi32>
    %15 = arith.cmpi eq, %14, %0 : vector<128x128xi32>
    %16 = arith.extui %15 : vector<128x128xi1> to vector<128x128xi32>
    %17 = arith.sitofp %16 : vector<128x128xi32> to vector<128x128xf32>
    %c0_4 = arith.constant 0 : index
    %c0_5 = arith.constant 0 : index
    %18 = vector.load %arg5[%c0_4, %c0_5] : memref<128x256xf32, #tpu.memory_space<vmem>>, vector<128x256xf32>
    %cst_6 = arith.constant dense<0.000000e+00> : vector<128x256xf32>
    %19 = tpu.matmul %17, %18, %cst_6 {dimension_numbers = #tpu.dot_dimension_numbers<[1], [0], [0], [1], [0, 0, 1, 1], [], []>} : vector<128x128xf32>, vector<128x256xf32>, vector<128x256xf32> -> vector<128x256xf32>
    %20 = arith.subf %11, %19 : vector<128x256xf32>
    %21 = arith.mulf %20, %20 : vector<128x256xf32>
    %cst_7 = arith.constant dense<0.000000e+00> : vector<128xf32>
    %22 = vector.multi_reduction <add>, %21, %cst_7 [1] : vector<128x256xf32> to vector<128xf32>
    %23 = vector.shape_cast %22 : vector<128xf32> to vector<128x1xf32>
    %24 = arith.addf %1, %23 : vector<128x1xf32>
    %c1_i32 = arith.constant 1 : i32
    %cst_8 = arith.constant 0.000000e+00 : f32
    %25 = vector.broadcast %cst_8 : f32 to vector<128x1xf32>
    %c0_i32_9 = arith.constant 0 : i32
    %c128_i32_10 = arith.constant 128 : i32
    %26 = arith.muli %c0_i32_9, %c128_i32_10 : i32
    %27 = tpu.assume_multiple %26, 128 : i32
    %28 = arith.index_cast %27 : i32 to index
    %c0_11 = arith.constant 0 : index
    %29 = vector.load %arg2[%28, %c0_11] : memref<128x1xi32, #tpu.memory_space<vmem>>, vector<128x1xi32>
    %30 = vector.broadcast %29 : vector<128x1xi32> to vector<128x128xi32>
    %31 = arith.cmpi eq, %30, %0 : vector<128x128xi32>
    %32 = arith.extui %31 : vector<128x128xi1> to vector<128x128xi32>
    %33 = arith.sitofp %32 : vector<128x128xi32> to vector<128x128xf32>
    %c0_12 = arith.constant 0 : index
    %c0_13 = arith.constant 0 : index
    %34 = vector.load %arg6[%c0_12, %c0_13] : memref<128x256xf32, #tpu.memory_space<vmem>>, vector<128x256xf32>
    %cst_14 = arith.constant dense<0.000000e+00> : vector<128x256xf32>
    %35 = tpu.matmul %33, %34, %cst_14 {dimension_numbers = #tpu.dot_dimension_numbers<[1], [0], [0], [1], [0, 0, 1, 1], [], []>} : vector<128x128xf32>, vector<128x256xf32>, vector<128x256xf32> -> vector<128x256xf32>
    %36 = arith.index_cast %27 : i32 to index
    %c0_15 = arith.constant 0 : index
    %37 = vector.load %arg3[%36, %c0_15] : memref<128x1xi32, #tpu.memory_space<vmem>>, vector<128x1xi32>
    %38 = vector.broadcast %37 : vector<128x1xi32> to vector<128x128xi32>
    %39 = arith.cmpi eq, %38, %0 : vector<128x128xi32>
    %40 = arith.extui %39 : vector<128x128xi1> to vector<128x128xi32>
    %41 = arith.sitofp %40 : vector<128x128xi32> to vector<128x128xf32>
    %c0_16 = arith.constant 0 : index
    %c0_17 = arith.constant 0 : index
    %42 = vector.load %arg5[%c0_16, %c0_17] : memref<128x256xf32, #tpu.memory_space<vmem>>, vector<128x256xf32>
    %cst_18 = arith.constant dense<0.000000e+00> : vector<128x256xf32>
    %43 = tpu.matmul %41, %42, %cst_18 {dimension_numbers = #tpu.dot_dimension_numbers<[1], [0], [0], [1], [0, 0, 1, 1], [], []>} : vector<128x128xf32>, vector<128x256xf32>, vector<128x256xf32> -> vector<128x256xf32>
    %44 = arith.subf %35, %43 : vector<128x256xf32>
    %45 = arith.mulf %44, %44 : vector<128x256xf32>
    %cst_19 = arith.constant dense<0.000000e+00> : vector<128xf32>
    %46 = vector.multi_reduction <add>, %45, %cst_19 [1] : vector<128x256xf32> to vector<128xf32>
    %47 = vector.shape_cast %46 : vector<128xf32> to vector<128x1xf32>
    %48 = arith.index_cast %27 : i32 to index
    %c0_20 = arith.constant 0 : index
    %49 = vector.load %arg4[%48, %c0_20] : memref<128x1xf32, #tpu.memory_space<vmem>>, vector<128x1xf32>
    %50 = arith.mulf %47, %49 : vector<128x1xf32>
    %cst_21 = arith.constant 5.000000e+00 : f32
    %51 = vector.broadcast %cst_21 : f32 to vector<128x1xf32>
    %52 = arith.subf %51, %47 : vector<128x1xf32>
    %cst_22 = arith.constant 0.000000e+00 : f32
    %53 = vector.broadcast %cst_22 : f32 to vector<128x1xf32>
    %54 = arith.maximumf %52, %53 : vector<128x1xf32>
    %cst_23 = arith.constant 1.000000e+00 : f32
    %55 = vector.broadcast %cst_23 : f32 to vector<128x1xf32>
    %56 = arith.subf %55, %49 : vector<128x1xf32>
    %57 = arith.mulf %54, %56 : vector<128x1xf32>
    %58 = arith.addf %50, %57 : vector<128x1xf32>
    %59 = arith.addf %25, %58 : vector<128x1xf32>
    %c1_i32_24 = arith.constant 1 : i32
    %60 = vector.shape_cast %24 : vector<128x1xf32> to vector<1x128x1xf32>
    %cst_25 = arith.constant dense<0.000000e+00> : vector<1xf32>
    %61 = vector.multi_reduction <add>, %60, %cst_25 [1, 2] : vector<1x128x1xf32> to vector<1xf32>
    %62 = vector.shape_cast %61 : vector<1xf32> to vector<1x1x1xf32>
    %63 = vector.extract %62[0, 0, 0] : f32 from vector<1x1x1xf32>
    %cst_26 = arith.constant 0.0833333358 : f32
    %64 = arith.mulf %63, %cst_26 : f32
    %65 = vector.shape_cast %59 : vector<128x1xf32> to vector<1x128x1xf32>
    %cst_27 = arith.constant dense<0.000000e+00> : vector<1xf32>
    %66 = vector.multi_reduction <add>, %65, %cst_27 [1, 2] : vector<1x128x1xf32> to vector<1xf32>
    %67 = vector.shape_cast %66 : vector<1xf32> to vector<1x1x1xf32>
    %68 = vector.extract %67[0, 0, 0] : f32 from vector<1x1x1xf32>
    %cst_28 = arith.constant 5.000000e-02 : f32
    %69 = arith.mulf %68, %cst_28 : f32
    %70 = arith.addf %64, %69 : f32
    %c0_29 = arith.constant 0 : index
    %71 = memref.load %arg7[%c0_29] : memref<1xf32, #tpu.memory_space<smem>>
    memref.store %70, %arg7[%c0_29] : memref<1xf32, #tpu.memory_space<smem>>
    return
  }
}

</mosaic_0001>

<llo_original>
// kernel: tpu_custom_call.1
$region0: #{tpu_custom_call.1}
  #allocation0 [shape = 'u32[]', space=smem, size = 0x4, offset = 0x4, fixed_abs, tag = 'smem constant byte address 0x4 - core index']
  #allocation1 [shape = 'u32[72,128]{1,0:T(1,128)}', space=vmem, size = 0x9000, scoped, tag = 'internal scratch']
  %s0 = inlined_call_operand.vmem [shape: s32[128,1], index: 0, kind: input, shape index: {}]
  %s1 = inlined_call_operand.vmem [shape: s32[128,1], index: 1, kind: input, shape index: {}]
  %s2 = inlined_call_operand.vmem [shape: s32[128,1], index: 2, kind: input, shape index: {}]
  %s3 = inlined_call_operand.vmem [shape: s32[128,1], index: 3, kind: input, shape index: {}]
  %s4 = inlined_call_operand.vmem [shape: f32[128,1], index: 4, kind: input, shape index: {}]
  %s5 = inlined_call_operand.vmem [shape: f32[128,256], index: 5, kind: input, shape index: {}]
  %s6 = inlined_call_operand.vmem [shape: f32[128,256], index: 6, kind: input, shape index: {}]
  %s7 = inlined_call_operand.hbm [shape: f32[1], index: 7, kind: output, shape index: {}]
  %s8 = sld [smem:[#allocation0]]
  $region38: #{tpu_custom_call.1} parent=0
    _
  %s10 = ssub.s32 1, %s8
  %s11 = scalar_select 0, %s10, %s8
  $region1: #{tpu_custom_call.1} parent=0
    #allocation2 [shape = 'u8[512]{0}', space=smem, size = 0x200, scoped, tag = 'output window, operand 0, single buffered']
    #allocation3 [shape = 's32[1]{0}', space=sflag, size = 0x4, scoped, tag = 'scoped memory for tpu_custom_call.1']
    %12 = vsyncpa [#allocation3], 0
    // Predicated region
    $region2: #{tpu_custom_call.1} parent=1 // pred_check
      _
    $region3: #{tpu_custom_call.1} parent=1 // pred_check_branch
      %14 = sbr.rel (0) target = $region5
    $region4: #{tpu_custom_call.1} parent=1 // pred_region
      _
    $region5: #{tpu_custom_call.1} parent=1 // pred_fallthru
      _
    // Predicated region
    $region6: #{tpu_custom_call.1} parent=1 // pred_check
      _
    $region7: #{tpu_custom_call.1} parent=1 // pred_check_branch
      %16 = sbr.rel (0) target = $region9
    $region8: #{tpu_custom_call.1} parent=1 // pred_region
      _
    $region9: #{tpu_custom_call.1} parent=1 // pred_fallthru
      _
    // Predicated region
    $region10: #{tpu_custom_call.1} parent=1 // pred_check
      _
    $region11: #{tpu_custom_call.1} parent=1 // pred_check_branch
      %18 = sbr.rel (0) target = $region13
    $region12: #{tpu_custom_call.1} parent=1 // pred_region
      _
    $region13: #{tpu_custom_call.1} parent=1 // pred_fallthru
      _
    // Predicated region
    $region14: #{tpu_custom_call.1} parent=1 // pred_check
      _
    $region15: #{tpu_custom_call.1} parent=1 // pred_check_branch
      %20 = sbr.rel (0) target = $region17
    $region16: #{tpu_custom_call.1} parent=1 // pred_region
      _
    $region17: #{tpu_custom_call.1} parent=1 // pred_fallthru
      _
    // Predicated region
    $region18: #{tpu_custom_call.1} parent=1 // pred_check
      _
    $region19: #{tpu_custom_call.1} parent=1 // pred_check_branch
      %22 = sbr.rel (0) target = $region21
    $region20: #{tpu_custom_call.1} parent=1 // pred_region
      _
    $region21: #{tpu_custom_call.1} parent=1 // pred_fallthru
      _
    // Predicated region
    $region22: #{tpu_custom_call.1} parent=1 // pred_check
      _
    $region23: #{tpu_custom_call.1} parent=1 // pred_check_branch
      %24 = sbr.rel (0) target = $region25
    $region24: #{tpu_custom_call.1} parent=1 // pred_region
      _
    $region25: #{tpu_custom_call.1} parent=1 // pred_fallthru
      _
    // Predicated region
    $region26: #{tpu_custom_call.1} parent=1 // pred_check
      _
    $region27: #{tpu_custom_call.1} parent=1 // pred_check_branch
      %26 = sbr.rel (0) target = $region29
    $region28: #{tpu_custom_call.1} parent=1 // pred_region
      _
    $region29: #{tpu_custom_call.1} parent=1 // pred_fallthru
      _
    %v27 = vlaneseq
    %v28 = vand.u32 %v27, 127
    %v29 = vld [vmem:[%s0] sm:$0xff]
    %v30 = vld [vmem:[%s0 + $0x8] sm:$0xff]
    %v31 = vld [vmem:[%s0 + $0x10] sm:$0xff]
    %v32 = vld [vmem:[%s0 + $0x18] sm:$0xff]
    %v33 = vld [vmem:[%s0 + $0x20] sm:$0xff]
    %v34 = vld [vmem:[%s0 + $0x28] sm:$0xff]
    %v35 = vld [vmem:[%s0 + $0x30] sm:$0xff]
    %v36 = vld [vmem:[%s0 + $0x38] sm:$0xff]
    %v37 = vld [vmem:[%s0 + $0x40] sm:$0xff]
    %v38 = vld [vmem:[%s0 + $0x48] sm:$0xff]
    %v39 = vld [vmem:[%s0 + $0x50] sm:$0xff]
    %v40 = vld [vmem:[%s0 + $0x58] sm:$0xff]
    %v41 = vld [vmem:[%s0 + $0x60] sm:$0xff]
    %v42 = vld [vmem:[%s0 + $0x68] sm:$0xff]
    %v43 = vld [vmem:[%s0 + $0x70] sm:$0xff]
    %v44 = vld [vmem:[%s0 + $0x78] sm:$0xff]
    %45 = vset.pattern.permute.xlu0 0
    %46 = vperm.xlu0 %45, %v29
    %v47 = vpop.permute.xlu0 %46
    %48 = vset.pattern.permute.xlu0 0
    %49 = vperm.xlu0 %48, %v30
    %v50 = vpop.permute.xlu0 %49
    %51 = vset.pattern.permute.xlu0 0
    %52 = vperm.xlu0 %51, %v31
    %v53 = vpop.permute.xlu0 %52
    %54 = vset.pattern.permute.xlu0 0
    %55 = vperm.xlu0 %54, %v32
    %v56 = vpop.permute.xlu0 %55
    %57 = vset.pattern.permute.xlu0 0
    %58 = vperm.xlu0 %57, %v33
    %v59 = vpop.permute.xlu0 %58
    %60 = vset.pattern.permute.xlu0 0
    %61 = vperm.xlu0 %60, %v34
    %v62 = vpop.permute.xlu0 %61
    %63 = vset.pattern.permute.xlu0 0
    %64 = vperm.xlu0 %63, %v35
    %v65 = vpop.permute.xlu0 %64
    %66 = vset.pattern.permute.xlu0 0
    %67 = vperm.xlu0 %66, %v36
    %v68 = vpop.permute.xlu0 %67
    %69 = vset.pattern.permute.xlu0 0
    %70 = vperm.xlu0 %69, %v37
    %v71 = vpop.permute.xlu0 %70
    %72 = vset.pattern.permute.xlu0 0
    %73 = vperm.xlu0 %72, %v38
    %v74 = vpop.permute.xlu0 %73
    %75 = vset.pattern.permute.xlu0 0
    %76 = vperm.xlu0 %75, %v39
    %v77 = vpop.permute.xlu0 %76
    %78 = vset.pattern.permute.xlu0 0
    %79 = vperm.xlu0 %78, %v40
    %v80 = vpop.permute.xlu0 %79
    %81 = vset.pattern.permute.xlu0 0
    %82 = vperm.xlu0 %81, %v41
    %v83 = vpop.permute.xlu0 %82
    %84 = vset.pattern.permute.xlu0 0
    %85 = vperm.xlu0 %84, %v42
    %v86 = vpop.permute.xlu0 %85
    %87 = vset.pattern.permute.xlu0 0
    %88 = vperm.xlu0 %87, %v43
    %v89 = vpop.permute.xlu0 %88
    %90 = vset.pattern.permute.xlu0 0
    %91 = vperm.xlu0 %90, %v44
    %v92 = vpop.permute.xlu0 %91
    %vm93 = vcmp.eq.s32.totalorder %v47, %v28
    %vm94 = vcmp.eq.s32.totalorder %v50, %v28
    %vm95 = vcmp.eq.s32.totalorder %v53, %v28
    %vm96 = vcmp.eq.s32.totalorder %v56, %v28
    %vm97 = vcmp.eq.s32.totalorder %v59, %v28
    %vm98 = vcmp.eq.s32.totalorder %v62, %v28
    %vm99 = vcmp.eq.s32.totalorder %v65, %v28
    %vm100 = vcmp.eq.s32.totalorder %v68, %v28
    %vm101 = vcmp.eq.s32.totalorder %v71, %v28
    %vm102 = vcmp.eq.s32.totalorder %v74, %v28
    %vm103 = vcmp.eq.s32.totalorder %v77, %v28
    %vm104 = vcmp.eq.s32.totalorder %v80, %v28
    %vm105 = vcmp.eq.s32.totalorder %v83, %v28
    %vm106 = vcmp.eq.s32.totalorder %v86, %v28
    %vm107 = vcmp.eq.s32.totalorder %v89, %v28
    %vm108 = vcmp.eq.s32.totalorder %v92, %v28
    %v109 = vsel %vm93, 1, 0
    %v110 = vsel %vm94, 1, 0
    %v111 = vsel %vm95, 1, 0
    %v112 = vsel %vm96, 1, 0
    %v113 = vsel %vm97, 1, 0
    %v114 = vsel %vm98, 1, 0
    %v115 = vsel %vm99, 1, 0
    %v116 = vsel %vm100, 1, 0
    %v117 = vsel %vm101, 1, 0
    %v118 = vsel %vm102, 1, 0
    %v119 = vsel %vm103, 1, 0
    %v120 = vsel %vm104, 1, 0
    %v121 = vsel %vm105, 1, 0
    %v122 = vsel %vm106, 1, 0
    %v123 = vsel %vm107, 1, 0
    %v124 = vsel %vm108, 1, 0
    %v125 = vcvt.s32.f32 %v109
    %v126 = vcvt.s32.f32 %v110
    %v127 = vcvt.s32.f32 %v111
    %v128 = vcvt.s32.f32 %v112
    %v129 = vcvt.s32.f32 %v113
    %v130 = vcvt.s32.f32 %v114
    %v131 = vcvt.s32.f32 %v115
    %v132 = vcvt.s32.f32 %v116
    %v133 = vcvt.s32.f32 %v117
    %v134 = vcvt.s32.f32 %v118
    %v135 = vcvt.s32.f32 %v119
    %v136 = vcvt.s32.f32 %v120
    %v137 = vcvt.s32.f32 %v121
    %v138 = vcvt.s32.f32 %v122
    %v139 = vcvt.s32.f32 %v123
    %v140 = vcvt.s32.f32 %v124
    %v141 = vld [vmem:[%s6] sm:$0xff]
    %v142 = vld [vmem:[%s6 + $0x8] sm:$0xff]
    %v143 = vld [vmem:[%s6 + $0x10] sm:$0xff]
    %v144 = vld [vmem:[%s6 + $0x18] sm:$0xff]
    %v145 = vld [vmem:[%s6 + $0x20] sm:$0xff]
    %v146 = vld [vmem:[%s6 + $0x28] sm:$0xff]
    %v147 = vld [vmem:[%s6 + $0x30] sm:$0xff]
    %v148 = vld [vmem:[%s6 + $0x38] sm:$0xff]
    %v149 = vld [vmem:[%s6 + $0x40] sm:$0xff]
    %v150 = vld [vmem:[%s6 + $0x48] sm:$0xff]
    %v151 = vld [vmem:[%s6 + $0x50] sm:$0xff]
    %v152 = vld [vmem:[%s6 + $0x58] sm:$0xff]
    %v153 = vld [vmem:[%s6 + $0x60] sm:$0xff]
    %v154 = vld [vmem:[%s6 + $0x68] sm:$0xff]
    %v155 = vld [vmem:[%s6 + $0x70] sm:$0xff]
    %v156 = vld [vmem:[%s6 + $0x78] sm:$0xff]
    %v157 = vld [vmem:[%s6 + $0x80] sm:$0xff]
    %v158 = vld [vmem:[%s6 + $0x88] sm:$0xff]
    %v159 = vld [vmem:[%s6 + $0x90] sm:$0xff]
    %v160 = vld [vmem:[%s6 + $0x98] sm:$0xff]
    %v161 = vld [vmem:[%s6 + $0xa0] sm:$0xff]
    %v162 = vld [vmem:[%s6 + $0xa8] sm:$0xff]
    %v163 = vld [vmem:[%s6 + $0xb0] sm:$0xff]
    %v164 = vld [vmem:[%s6 + $0xb8] sm:$0xff]
    %v165 = vld [vmem:[%s6 + $0xc0] sm:$0xff]
    %v166 = vld [vmem:[%s6 + $0xc8] sm:$0xff]
    %v167 = vld [vmem:[%s6 + $0xd0] sm:$0xff]
    %v168 = vld [vmem:[%s6 + $0xd8] sm:$0xff]
    %v169 = vld [vmem:[%s6 + $0xe0] sm:$0xff]
    %v170 = vld [vmem:[%s6 + $0xe8] sm:$0xff]
    %v171 = vld [vmem:[%s6 + $0xf0] sm:$0xff]
    %v172 = vld [vmem:[%s6 + $0xf8] sm:$0xff]
    %173 = vmatpush.msra.mxu0 %v171
    %174 = vmatpush.msra.mxu0 %v169
    %175 = vmatpush.msra.mxu0 %v167
    %176 = vmatpush.msra.mxu0 %v165
    %177 = vmatpush.msra.mxu0 %v163
    %178 = vmatpush.msra.mxu0 %v161
    %179 = vmatpush.msra.mxu0 %v159
    %180 = vmatpush.msra.mxu0 %v157
    %181 = vmatpush.msra.mxu0 %v155
    %182 = vmatpush.msra.mxu0 %v153
    %183 = vmatpush.msra.mxu0 %v151
    %184 = vmatpush.msra.mxu0 %v149
    %185 = vmatpush.msra.mxu0 %v147
    %186 = vmatpush.msra.mxu0 %v145
    %187 = vmatpush.msra.mxu0 %v143
    %188 = vmatpush.msra.mxu0 %v141
    %189 = vmatmul.f32.gmra.mxu0 %v125
    %v190 = vpop.f32.mrf.mxu0
    %v191 = vadd.f32 0.0, %v190
    %192 = vmatmul.f32.gmra.mxu0 %v126
    %v193 = vpop.f32.mrf.mxu0
    %v194 = vadd.f32 0.0, %v193
    %195 = vmatmul.f32.gmra.mxu0 %v127
    %v196 = vpop.f32.mrf.mxu0
    %v197 = vadd.f32 0.0, %v196
    %198 = vmatmul.f32.gmra.mxu0 %v128
    %v199 = vpop.f32.mrf.mxu0
    %v200 = vadd.f32 0.0, %v199
    %201 = vmatmul.f32.gmra.mxu0 %v129
    %v202 = vpop.f32.mrf.mxu0
    %v203 = vadd.f32 0.0, %v202
    %204 = vmatmul.f32.gmra.mxu0 %v130
    %v205 = vpop.f32.mrf.mxu0
    %v206 = vadd.f32 0.0, %v205
    %207 = vmatmul.f32.gmra.mxu0 %v131
    %v208 = vpop.f32.mrf.mxu0
    %v209 = vadd.f32 0.0, %v208
    %210 = vmatmul.f32.gmra.mxu0 %v132
    %v211 = vpop.f32.mrf.mxu0
    %v212 = vadd.f32 0.0, %v211
    %213 = vmatmul.f32.gmra.mxu0 %v133
    %v214 = vpop.f32.mrf.mxu0
    %v215 = vadd.f32 0.0, %v214
    %216 = vmatmul.f32.gmra.mxu0 %v134
    %v217 = vpop.f32.mrf.mxu0
    %v218 = vadd.f32 0.0, %v217
    %219 = vmatmul.f32.gmra.mxu0 %v135
    %v220 = vpop.f32.mrf.mxu0
    %v221 = vadd.f32 0.0, %v220
    %222 = vmatmul.f32.gmra.mxu0 %v136
    %v223 = vpop.f32.mrf.mxu0
    %v224 = vadd.f32 0.0, %v223
    %225 = vmatmul.f32.gmra.mxu0 %v137
    %v226 = vpop.f32.mrf.mxu0
    %v227 = vadd.f32 0.0, %v226
    %228 = vmatmul.f32.gmra.mxu0 %v138
    %v229 = vpop.f32.mrf.mxu0
    %v230 = vadd.f32 0.0, %v229
    %231 = vmatmul.f32.gmra.mxu0 %v139
    %v232 = vpop.f32.mrf.mxu0
    %v233 = vadd.f32 0.0, %v232
    %234 = vmatmul.f32.gmra.mxu0 %v140
    %v235 = vpop.f32.mrf.mxu0
    %v236 = vadd.f32 0.0, %v235
    %237 = vdwg.mxu0
    %238 = vmatpush.msra.mxu0 %v172
    %239 = vmatpush.msra.mxu0 %v170
    %240 = vmatpush.msra.mxu0 %v168
    %241 = vmatpush.msra.mxu0 %v166
    %242 = vmatpush.msra.mxu0 %v164
    %243 = vmatpush.msra.mxu0 %v162
    %244 = vmatpush.msra.mxu0 %v160
    %245 = vmatpush.msra.mxu0 %v158
    %246 = vmatpush.msra.mxu0 %v156
    %247 = vmatpush.msra.mxu0 %v154
    %248 = vmatpush.msra.mxu0 %v152
    %249 = vmatpush.msra.mxu0 %v150
    %250 = vmatpush.msra.mxu0 %v148
    %251 = vmatpush.msra.mxu0 %v146
    %252 = vmatpush.msra.mxu0 %v144
    %253 = vmatpush.msra.mxu0 %v142
    %254 = vmatmul.f32.gmra.mxu0 %v125
    %v255 = vpop.f32.mrf.mxu0
    %v256 = vadd.f32 0.0, %v255
    %257 = vmatmul.f32.gmra.mxu0 %v126
    %v258 = vpop.f32.mrf.mxu0
    %v259 = vadd.f32 0.0, %v258
    %260 = vmatmul.f32.gmra.mxu0 %v127
    %v261 = vpop.f32.mrf.mxu0
    %v262 = vadd.f32 0.0, %v261
    %263 = vmatmul.f32.gmra.mxu0 %v128
    %v264 = vpop.f32.mrf.mxu0
    %v265 = vadd.f32 0.0, %v264
    %266 = vmatmul.f32.gmra.mxu0 %v129
    %v267 = vpop.f32.mrf.mxu0
    %v268 = vadd.f32 0.0, %v267
    %269 = vmatmul.f32.gmra.mxu0 %v130
    %v270 = vpop.f32.mrf.mxu0
    %v271 = vadd.f32 0.0, %v270
    %272 = vmatmul.f32.gmra.mxu0 %v131
    %v273 = vpop.f32.mrf.mxu0
    %v274 = vadd.f32 0.0, %v273
    %275 = vmatmul.f32.gmra.mxu0 %v132
    %v276 = vpop.f32.mrf.mxu0
    %v277 = vadd.f32 0.0, %v276
    %278 = vmatmul.f32.gmra.mxu0 %v133
    %v279 = vpop.f32.mrf.mxu0
    %v280 = vadd.f32 0.0, %v279
    %281 = vmatmul.f32.gmra.mxu0 %v134
    %v282 = vpop.f32.mrf.mxu0
    %v283 = vadd.f32 0.0, %v282
    %284 = vmatmul.f32.gmra.mxu0 %v135
    %v285 = vpop.f32.mrf.mxu0
    %v286 = vadd.f32 0.0, %v285
    %287 = vmatmul.f32.gmra.mxu0 %v136
    %v288 = vpop.f32.mrf.mxu0
    %v289 = vadd.f32 0.0, %v288
    %290 = vmatmul.f32.gmra.mxu0 %v137
    %v291 = vpop.f32.mrf.mxu0
    %v292 = vadd.f32 0.0, %v291
    %293 = vmatmul.f32.gmra.mxu0 %v138
    %v294 = vpop.f32.mrf.mxu0
    %v295 = vadd.f32 0.0, %v294
    %296 = vmatmul.f32.gmra.mxu0 %v139
    %v297 = vpop.f32.mrf.mxu0
    %v298 = vadd.f32 0.0, %v297
    %299 = vmatmul.f32.gmra.mxu0 %v140
    %v300 = vpop.f32.mrf.mxu0
    %v301 = vadd.f32 0.0, %v300
    %302 = vdwg.mxu0
    %v303 = vld [vmem:[%s1] sm:$0xff]
    %v304 = vld [vmem:[%s1 + $0x8] sm:$0xff]
    %v305 = vld [vmem:[%s1 + $0x10] sm:$0xff]
    %v306 = vld [vmem:[%s1 + $0x18] sm:$0xff]
    %v307 = vld [vmem:[%s1 + $0x20] sm:$0xff]
    %v308 = vld [vmem:[%s1 + $0x28] sm:$0xff]
    %v309 = vld [vmem:[%s1 + $0x30] sm:$0xff]
    %v310 = vld [vmem:[%s1 + $0x38] sm:$0xff]
    %v311 = vld [vmem:[%s1 + $0x40] sm:$0xff]
    %v312 = vld [vmem:[%s1 + $0x48] sm:$0xff]
    %v313 = vld [vmem:[%s1 + $0x50] sm:$0xff]
    %v314 = vld [vmem:[%s1 + $0x58] sm:$0xff]
    %v315 = vld [vmem:[%s1 + $0x60] sm:$0xff]
    %v316 = vld [vmem:[%s1 + $0x68] sm:$0xff]
    %v317 = vld [vmem:[%s1 + $0x70] sm:$0xff]
    %v318 = vld [vmem:[%s1 + $0x78] sm:$0xff]
    %319 = vset.pattern.permute.xlu0 0
    %320 = vperm.xlu0 %319, %v303
    %v321 = vpop.permute.xlu0 %320
    %322 = vset.pattern.permute.xlu0 0
    %323 = vperm.xlu0 %322, %v304
    %v324 = vpop.permute.xlu0 %323
    %325 = vset.pattern.permute.xlu0 0
    %326 = vperm.xlu0 %325, %v305
    %v327 = vpop.permute.xlu0 %326
    %328 = vset.pattern.permute.xlu0 0
    %329 = vperm.xlu0 %328, %v306
    %v330 = vpop.permute.xlu0 %329
    %331 = vset.pattern.permute.xlu0 0
    %332 = vperm.xlu0 %331, %v307
    %v333 = vpop.permute.xlu0 %332
    %334 = vset.pattern.permute.xlu0 0
    %335 = vperm.xlu0 %334, %v308
    %v336 = vpop.permute.xlu0 %335
    %337 = vset.pattern.permute.xlu0 0
    %338 = vperm.xlu0 %337, %v309
    %v339 = vpop.permute.xlu0 %338
    %340 = vset.pattern.permute.xlu0 0
    %341 = vperm.xlu0 %340, %v310
    %v342 = vpop.permute.xlu0 %341
    %343 = vset.pattern.permute.xlu0 0
    %344 = vperm.xlu0 %343, %v311
    %v345 = vpop.permute.xlu0 %344
    %346 = vset.pattern.permute.xlu0 0
    %347 = vperm.xlu0 %346, %v312
    %v348 = vpop.permute.xlu0 %347
    %349 = vset.pattern.permute.xlu0 0
    %350 = vperm.xlu0 %349, %v313
    %v351 = vpop.permute.xlu0 %350
    %352 = vset.pattern.permute.xlu0 0
    %353 = vperm.xlu0 %352, %v314
    %v354 = vpop.permute.xlu0 %353
    %355 = vset.pattern.permute.xlu0 0
    %356 = vperm.xlu0 %355, %v315
    %v357 = vpop.permute.xlu0 %356
    %358 = vset.pattern.permute.xlu0 0
    %359 = vperm.xlu0 %358, %v316
    %v360 = vpop.permute.xlu0 %359
    %361 = vset.pattern.permute.xlu0 0
    %362 = vperm.xlu0 %361, %v317
    %v363 = vpop.permute.xlu0 %362
    %364 = vset.pattern.permute.xlu0 0
    %365 = vperm.xlu0 %364, %v318
    %v366 = vpop.permute.xlu0 %365
    %vm367 = vcmp.eq.s32.totalorder %v321, %v28
    %vm368 = vcmp.eq.s32.totalorder %v324, %v28
    %vm369 = vcmp.eq.s32.totalorder %v327, %v28
    %vm370 = vcmp.eq.s32.totalorder %v330, %v28
    %vm371 = vcmp.eq.s32.totalorder %v333, %v28
    %vm372 = vcmp.eq.s32.totalorder %v336, %v28
    %vm373 = vcmp.eq.s32.totalorder %v339, %v28
    %vm374 = vcmp.eq.s32.totalorder %v342, %v28
    %vm375 = vcmp.eq.s32.totalorder %v345, %v28
    %vm376 = vcmp.eq.s32.totalorder %v348, %v28
    %vm377 = vcmp.eq.s32.totalorder %v351, %v28
    %vm378 = vcmp.eq.s32.totalorder %v354, %v28
    %vm379 = vcmp.eq.s32.totalorder %v357, %v28
    %vm380 = vcmp.eq.s32.totalorder %v360, %v28
    %vm381 = vcmp.eq.s32.totalorder %v363, %v28
    %vm382 = vcmp.eq.s32.totalorder %v366, %v28
    %v383 = vsel %vm367, 1, 0
    %v384 = vsel %vm368, 1, 0
    %v385 = vsel %vm369, 1, 0
    %v386 = vsel %vm370, 1, 0
    %v387 = vsel %vm371, 1, 0
    %v388 = vsel %vm372, 1, 0
    %v389 = vsel %vm373, 1, 0
    %v390 = vsel %vm374, 1, 0
    %v391 = vsel %vm375, 1, 0
    %v392 = vsel %vm376, 1, 0
    %v393 = vsel %vm377, 1, 0
    %v394 = vsel %vm378, 1, 0
    %v395 = vsel %vm379, 1, 0
    %v396 = vsel %vm380, 1, 0
    %v397 = vsel %vm381, 1, 0
    %v398 = vsel %vm382, 1, 0
    %v399 = vcvt.s32.f32 %v383
    %v400 = vcvt.s32.f32 %v384
    %v401 = vcvt.s32.f32 %v385
    %v402 = vcvt.s32.f32 %v386
    %v403 = vcvt.s32.f32 %v387
    %v404 = vcvt.s32.f32 %v388
    %v405 = vcvt.s32.f32 %v389
    %v406 = vcvt.s32.f32 %v390
    %v407 = vcvt.s32.f32 %v391
    %v408 = vcvt.s32.f32 %v392
    %v409 = vcvt.s32.f32 %v393
    %v410 = vcvt.s32.f32 %v394
    %v411 = vcvt.s32.f32 %v395
    %v412 = vcvt.s32.f32 %v396
    %v413 = vcvt.s32.f32 %v397
    %v414 = vcvt.s32.f32 %v398
    %v415 = vld [vmem:[%s5] sm:$0xff]
    %v416 = vld [vmem:[%s5 + $0x8] sm:$0xff]
    %v417 = vld [vmem:[%s5 + $0x10] sm:$0xff]
    %v418 = vld [vmem:[%s5 + $0x18] sm:$0xff]
    %v419 = vld [vmem:[%s5 + $0x20] sm:$0xff]
    %v420 = vld [vmem:[%s5 + $0x28] sm:$0xff]
    %v421 = vld [vmem:[%s5 + $0x30] sm:$0xff]
    %v422 = vld [vmem:[%s5 + $0x38] sm:$0xff]
    %v423 = vld [vmem:[%s5 + $0x40] sm:$0xff]
    %v424 = vld [vmem:[%s5 + $0x48] sm:$0xff]
    %v425 = vld [vmem:[%s5 + $0x50] sm:$0xff]
    %v426 = vld [vmem:[%s5 + $0x58] sm:$0xff]
    %v427 = vld [vmem:[%s5 + $0x60] sm:$0xff]
    %v428 = vld [vmem:[%s5 + $0x68] sm:$0xff]
    %v429 = vld [vmem:[%s5 + $0x70] sm:$0xff]
    %v430 = vld [vmem:[%s5 + $0x78] sm:$0xff]
    %v431 = vld [vmem:[%s5 + $0x80] sm:$0xff]
    %v432 = vld [vmem:[%s5 + $0x88] sm:$0xff]
    %v433 = vld [vmem:[%s5 + $0x90] sm:$0xff]
    %v434 = vld [vmem:[%s5 + $0x98] sm:$0xff]
    %v435 = vld [vmem:[%s5 + $0xa0] sm:$0xff]
    %v436 = vld [vmem:[%s5 + $0xa8] sm:$0xff]
    %v437 = vld [vmem:[%s5 + $0xb0] sm:$0xff]
    %v438 = vld [vmem:[%s5 + $0xb8] sm:$0xff]
    %v439 = vld [vmem:[%s5 + $0xc0] sm:$0xff]
    %v440 = vld [vmem:[%s5 + $0xc8] sm:$0xff]
    %v441 = vld [vmem:[%s5 + $0xd0] sm:$0xff]
    %v442 = vld [vmem:[%s5 + $0xd8] sm:$0xff]
    %v443 = vld [vmem:[%s5 + $0xe0] sm:$0xff]
    %v444 = vld [vmem:[%s5 + $0xe8] sm:$0xff]
    %v445 = vld [vmem:[%s5 + $0xf0] sm:$0xff]
    %v446 = vld [vmem:[%s5 + $0xf8] sm:$0xff]
    %447 = vmatpush.msra.mxu0 %v445
    %448 = vmatpush.msra.mxu0 %v443
    %449 = vmatpush.msra.mxu0 %v441
    %450 = vmatpush.msra.mxu0 %v439
    %451 = vmatpush.msra.mxu0 %v437
    %452 = vmatpush.msra.mxu0 %v435
    %453 = vmatpush.msra.mxu0 %v433
    %454 = vmatpush.msra.mxu0 %v431
    %455 = vmatpush.msra.mxu0 %v429
    %456 = vmatpush.msra.mxu0 %v427
    %457 = vmatpush.msra.mxu0 %v425
    %458 = vmatpush.msra.mxu0 %v423
    %459 = vmatpush.msra.mxu0 %v421
    %460 = vmatpush.msra.mxu0 %v419
    %461 = vmatpush.msra.mxu0 %v417
    %462 = vmatpush.msra.mxu0 %v415
    %463 = vmatmul.f32.gmra.mxu0 %v399
    %v464 = vpop.f32.mrf.mxu0
    %v465 = vadd.f32 0.0, %v464
    %466 = vmatmul.f32.gmra.mxu0 %v400
    %v467 = vpop.f32.mrf.mxu0
    %v468 = vadd.f32 0.0, %v467
    %469 = vmatmul.f32.gmra.mxu0 %v401
    %v470 = vpop.f32.mrf.mxu0
    %v471 = vadd.f32 0.0, %v470
    %472 = vmatmul.f32.gmra.mxu0 %v402
    %v473 = vpop.f32.mrf.mxu0
    %v474 = vadd.f32 0.0, %v473
    %475 = vmatmul.f32.gmra.mxu0 %v403
    %v476 = vpop.f32.mrf.mxu0
    %v477 = vadd.f32 0.0, %v476
    %478 = vmatmul.f32.gmra.mxu0 %v404
    %v479 = vpop.f32.mrf.mxu0
    %v480 = vadd.f32 0.0, %v479
    %481 = vmatmul.f32.gmra.mxu0 %v405
    %v482 = vpop.f32.mrf.mxu0
    %v483 = vadd.f32 0.0, %v482
    %484 = vmatmul.f32.gmra.mxu0 %v406
    %v485 = vpop.f32.mrf.mxu0
    %v486 = vadd.f32 0.0, %v485
    %487 = vmatmul.f32.gmra.mxu0 %v407
    %v488 = vpop.f32.mrf.mxu0
    %v489 = vadd.f32 0.0, %v488
    %490 = vmatmul.f32.gmra.mxu0 %v408
    %v491 = vpop.f32.mrf.mxu0
    %v492 = vadd.f32 0.0, %v491
    %493 = vmatmul.f32.gmra.mxu0 %v409
    %v494 = vpop.f32.mrf.mxu0
    %v495 = vadd.f32 0.0, %v494
    %496 = vmatmul.f32.gmra.mxu0 %v410
    %v497 = vpop.f32.mrf.mxu0
    %v498 = vadd.f32 0.0, %v497
    %499 = vmatmul.f32.gmra.mxu0 %v411
    %v500 = vpop.f32.mrf.mxu0
    %v501 = vadd.f32 0.0, %v500
    %502 = vmatmul.f32.gmra.mxu0 %v412
    %v503 = vpop.f32.mrf.mxu0
    %v504 = vadd.f32 0.0, %v503
    %505 = vmatmul.f32.gmra.mxu0 %v413
    %v506 = vpop.f32.mrf.mxu0
    %v507 = vadd.f32 0.0, %v506
    %508 = vmatmul.f32.gmra.mxu0 %v414
    %v509 = vpop.f32.mrf.mxu0
    %v510 = vadd.f32 0.0, %v509
    %511 = vdwg.mxu0
    %512 = vmatpush.msra.mxu0 %v446
    %513 = vmatpush.msra.mxu0 %v444
    %514 = vmatpush.msra.mxu0 %v442
    %515 = vmatpush.msra.mxu0 %v440
    %516 = vmatpush.msra.mxu0 %v438
    %517 = vmatpush.msra.mxu0 %v436
    %518 = vmatpush.msra.mxu0 %v434
    %519 = vmatpush.msra.mxu0 %v432
    %520 = vmatpush.msra.mxu0 %v430
    %521 = vmatpush.msra.mxu0 %v428
    %522 = vmatpush.msra.mxu0 %v426
    %523 = vmatpush.msra.mxu0 %v424
    %524 = vmatpush.msra.mxu0 %v422
    %525 = vmatpush.msra.mxu0 %v420
    %526 = vmatpush.msra.mxu0 %v418
    %527 = vmatpush.msra.mxu0 %v416
    %528 = vmatmul.f32.gmra.mxu0 %v399
    %v529 = vpop.f32.mrf.mxu0
    %v530 = vadd.f32 0.0, %v529
    %531 = vmatmul.f32.gmra.mxu0 %v400
    %v532 = vpop.f32.mrf.mxu0
    %v533 = vadd.f32 0.0, %v532
    %534 = vmatmul.f32.gmra.mxu0 %v401
    %v535 = vpop.f32.mrf.mxu0
    %v536 = vadd.f32 0.0, %v535
    %537 = vmatmul.f32.gmra.mxu0 %v402
    %v538 = vpop.f32.mrf.mxu0
    %v539 = vadd.f32 0.0, %v538
    %540 = vmatmul.f32.gmra.mxu0 %v403
    %v541 = vpop.f32.mrf.mxu0
    %v542 = vadd.f32 0.0, %v541
    %543 = vmatmul.f32.gmra.mxu0 %v404
    %v544 = vpop.f32.mrf.mxu0
    %v545 = vadd.f32 0.0, %v544
    %546 = vmatmul.f32.gmra.mxu0 %v405
    %v547 = vpop.f32.mrf.mxu0
    %v548 = vadd.f32 0.0, %v547
    %549 = vmatmul.f32.gmra.mxu0 %v406
    %v550 = vpop.f32.mrf.mxu0
    %v551 = vadd.f32 0.0, %v550
    %552 = vmatmul.f32.gmra.mxu0 %v407
    %v553 = vpop.f32.mrf.mxu0
    %v554 = vadd.f32 0.0, %v553
    %555 = vmatmul.f32.gmra.mxu0 %v408
    %v556 = vpop.f32.mrf.mxu0
    %v557 = vadd.f32 0.0, %v556
    %558 = vmatmul.f32.gmra.mxu0 %v409
    %v559 = vpop.f32.mrf.mxu0
    %v560 = vadd.f32 0.0, %v559
    %561 = vmatmul.f32.gmra.mxu0 %v410
    %v562 = vpop.f32.mrf.mxu0
    %v563 = vadd.f32 0.0, %v562
    %564 = vmatmul.f32.gmra.mxu0 %v411
    %v565 = vpop.f32.mrf.mxu0
    %v566 = vadd.f32 0.0, %v565
    %567 = vmatmul.f32.gmra.mxu0 %v412
    %v568 = vpop.f32.mrf.mxu0
    %v569 = vadd.f32 0.0, %v568
    %570 = vmatmul.f32.gmra.mxu0 %v413
    %v571 = vpop.f32.mrf.mxu0
    %v572 = vadd.f32 0.0, %v571
    %573 = vmatmul.f32.gmra.mxu0 %v414
    %v574 = vpop.f32.mrf.mxu0
    %v575 = vadd.f32 0.0, %v574
    %576 = vdwg.mxu0
    %v577 = vsub.f32 %v191, %v465
    %v578 = vsub.f32 %v256, %v530
    %v579 = vsub.f32 %v194, %v468
    %v580 = vsub.f32 %v259, %v533
    %v581 = vsub.f32 %v197, %v471
    %v582 = vsub.f32 %v262, %v536
    %v583 = vsub.f32 %v200, %v474
    %v584 = vsub.f32 %v265, %v539
    %v585 = vsub.f32 %v203, %v477
    %v586 = vsub.f32 %v268, %v542
    %v587 = vsub.f32 %v206, %v480
    %v588 = vsub.f32 %v271, %v545
    %v589 = vsub.f32 %v209, %v483
    %v590 = vsub.f32 %v274, %v548
    %v591 = vsub.f32 %v212, %v486
    %v592 = vsub.f32 %v277, %v551
    %v593 = vsub.f32 %v215, %v489
    %v594 = vsub.f32 %v280, %v554
    %v595 = vsub.f32 %v218, %v492
    %v596 = vsub.f32 %v283, %v557
    %v597 = vsub.f32 %v221, %v495
    %v598 = vsub.f32 %v286, %v560
    %v599 = vsub.f32 %v224, %v498
    %v600 = vsub.f32 %v289, %v563
    %v601 = vsub.f32 %v227, %v501
    %v602 = vsub.f32 %v292, %v566
    %v603 = vsub.f32 %v230, %v504
    %v604 = vsub.f32 %v295, %v569
    %v605 = vsub.f32 %v233, %v507
    %v606 = vsub.f32 %v298, %v572
    %v607 = vsub.f32 %v236, %v510
    %v608 = vsub.f32 %v301, %v575
    %v609 = vmul.f32 %v577, %v577
    %v610 = vmul.f32 %v578, %v578
    %v611 = vmul.f32 %v579, %v579
    %v612 = vmul.f32 %v580, %v580
    %v613 = vmul.f32 %v581, %v581
    %v614 = vmul.f32 %v582, %v582
    %v615 = vmul.f32 %v583, %v583
    %v616 = vmul.f32 %v584, %v584
    %v617 = vmul.f32 %v585, %v585
    %v618 = vmul.f32 %v586, %v586
    %v619 = vmul.f32 %v587, %v587
    %v620 = vmul.f32 %v588, %v588
    %v621 = vmul.f32 %v589, %v589
    %v622 = vmul.f32 %v590, %v590
    %v623 = vmul.f32 %v591, %v591
    %v624 = vmul.f32 %v592, %v592
    %v625 = vmul.f32 %v593, %v593
    %v626 = vmul.f32 %v594, %v594
    %v627 = vmul.f32 %v595, %v595
    %v628 = vmul.f32 %v596, %v596
    %v629 = vmul.f32 %v597, %v597
    %v630 = vmul.f32 %v598, %v598
    %v631 = vmul.f32 %v599, %v599
    %v632 = vmul.f32 %v600, %v600
    %v633 = vmul.f32 %v601, %v601
    %v634 = vmul.f32 %v602, %v602
    %v635 = vmul.f32 %v603, %v603
    %v636 = vmul.f32 %v604, %v604
    %v637 = vmul.f32 %v605, %v605
    %v638 = vmul.f32 %v606, %v606
    %v639 = vmul.f32 %v607, %v607
    %v640 = vmul.f32 %v608, %v608
    %v641 = vadd.f32 %v609, %v610
    %642 = vadd.xlane.f32.xlu0 %v641
    %v643 = vpop.xlane.xlu0 %642
    %v644 = vadd.f32 %v611, %v612
    %645 = vadd.xlane.f32.xlu0 %v644
    %v646 = vpop.xlane.xlu0 %645
    %v647 = vadd.f32 %v613, %v614
    %648 = vadd.xlane.f32.xlu0 %v647
    %v649 = vpop.xlane.xlu0 %648
    %v650 = vadd.f32 %v615, %v616
    %651 = vadd.xlane.f32.xlu0 %v650
    %v652 = vpop.xlane.xlu0 %651
    %v653 = vadd.f32 %v617, %v618
    %654 = vadd.xlane.f32.xlu0 %v653
    %v655 = vpop.xlane.xlu0 %654
    %v656 = vadd.f32 %v619, %v620
    %657 = vadd.xlane.f32.xlu0 %v656
    %v658 = vpop.xlane.xlu0 %657
    %v659 = vadd.f32 %v621, %v622
    %660 = vadd.xlane.f32.xlu0 %v659
    %v661 = vpop.xlane.xlu0 %660
    %v662 = vadd.f32 %v623, %v624
    %663 = vadd.xlane.f32.xlu0 %v662
    %v664 = vpop.xlane.xlu0 %663
    %v665 = vadd.f32 %v625, %v626
    %666 = vadd.xlane.f32.xlu0 %v665
    %v667 = vpop.xlane.xlu0 %666
    %v668 = vadd.f32 %v627, %v628
    %669 = vadd.xlane.f32.xlu0 %v668
    %v670 = vpop.xlane.xlu0 %669
    %v671 = vadd.f32 %v629, %v630
    %672 = vadd.xlane.f32.xlu0 %v671
    %v673 = vpop.xlane.xlu0 %672
    %v674 = vadd.f32 %v631, %v632
    %675 = vadd.xlane.f32.xlu0 %v674
    %v676 = vpop.xlane.xlu0 %675
    %v677 = vadd.f32 %v633, %v634
    %678 = vadd.xlane.f32.xlu0 %v677
    %v679 = vpop.xlane.xlu0 %678
    %v680 = vadd.f32 %v635, %v636
    %681 = vadd.xlane.f32.xlu0 %v680
    %v682 = vpop.xlane.xlu0 %681
    %v683 = vadd.f32 %v637, %v638
    %684 = vadd.xlane.f32.xlu0 %v683
    %v685 = vpop.xlane.xlu0 %684
    %v686 = vadd.f32 %v639, %v640
    %687 = vadd.xlane.f32.xlu0 %v686
    %v688 = vpop.xlane.xlu0 %687
    %v689 = vadd.f32 %v643, 0.0
    %v690 = vadd.f32 %v646, 0.0
    %v691 = vadd.f32 %v649, 0.0
    %v692 = vadd.f32 %v652, 0.0
    %v693 = vadd.f32 %v655, 0.0
    %v694 = vadd.f32 %v658, 0.0
    %v695 = vadd.f32 %v661, 0.0
    %v696 = vadd.f32 %v664, 0.0
    %v697 = vadd.f32 %v667, 0.0
    %v698 = vadd.f32 %v670, 0.0
    %v699 = vadd.f32 %v673, 0.0
    %v700 = vadd.f32 %v676, 0.0
    %v701 = vadd.f32 %v679, 0.0
    %v702 = vadd.f32 %v682, 0.0
    %v703 = vadd.f32 %v685, 0.0
    %v704 = vadd.f32 %v688, 0.0
    %v705 = vld [vmem:[%s2] sm:$0xff]
    %v706 = vld [vmem:[%s2 + $0x8] sm:$0xff]
    %v707 = vld [vmem:[%s2 + $0x10] sm:$0xff]
    %v708 = vld [vmem:[%s2 + $0x18] sm:$0xff]
    %v709 = vld [vmem:[%s2 + $0x20] sm:$0xff]
    %v710 = vld [vmem:[%s2 + $0x28] sm:$0xff]
    %v711 = vld [vmem:[%s2 + $0x30] sm:$0xff]
    %v712 = vld [vmem:[%s2 + $0x38] sm:$0xff]
    %v713 = vld [vmem:[%s2 + $0x40] sm:$0xff]
    %v714 = vld [vmem:[%s2 + $0x48] sm:$0xff]
    %v715 = vld [vmem:[%s2 + $0x50] sm:$0xff]
    %v716 = vld [vmem:[%s2 + $0x58] sm:$0xff]
    %v717 = vld [vmem:[%s2 + $0x60] sm:$0xff]
    %v718 = vld [vmem:[%s2 + $0x68] sm:$0xff]
    %v719 = vld [vmem:[%s2 + $0x70] sm:$0xff]
    %v720 = vld [vmem:[%s2 + $0x78] sm:$0xff]
    %721 = vset.pattern.permute.xlu0 0
    %722 = vperm.xlu0 %721, %v705
    %v723 = vpop.permute.xlu0 %722
    %724 = vset.pattern.permute.xlu0 0
    %725 = vperm.xlu0 %724, %v706
    %v726 = vpop.permute.xlu0 %725
    %727 = vset.pattern.permute.xlu0 0
    %728 = vperm.xlu0 %727, %v707
    %v729 = vpop.permute.xlu0 %728
    %730 = vset.pattern.permute.xlu0 0
    %731 = vperm.xlu0 %730, %v708
    %v732 = vpop.permute.xlu0 %731
    %733 = vset.pattern.permute.xlu0 0
    %734 = vperm.xlu0 %733, %v709
    %v735 = vpop.permute.xlu0 %734
    %736 = vset.pattern.permute.xlu0 0
    %737 = vperm.xlu0 %736, %v710
    %v738 = vpop.permute.xlu0 %737
    %739 = vset.pattern.permute.xlu0 0
    %740 = vperm.xlu0 %739, %v711
    %v741 = vpop.permute.xlu0 %740
    %742 = vset.pattern.permute.xlu0 0
    %743 = vperm.xlu0 %742, %v712
    %v744 = vpop.permute.xlu0 %743
    %745 = vset.pattern.permute.xlu0 0
    %746 = vperm.xlu0 %745, %v713
    %v747 = vpop.permute.xlu0 %746
    %748 = vset.pattern.permute.xlu0 0
    %749 = vperm.xlu0 %748, %v714
    %v750 = vpop.permute.xlu0 %749
    %751 = vset.pattern.permute.xlu0 0
    %752 = vperm.xlu0 %751, %v715
    %v753 = vpop.permute.xlu0 %752
    %754 = vset.pattern.permute.xlu0 0
    %755 = vperm.xlu0 %754, %v716
    %v756 = vpop.permute.xlu0 %755
    %757 = vset.pattern.permute.xlu0 0
    %758 = vperm.xlu0 %757, %v717
    %v759 = vpop.permute.xlu0 %758
    %760 = vset.pattern.permute.xlu0 0
    %761 = vperm.xlu0 %760, %v718
    %v762 = vpop.permute.xlu0 %761
    %763 = vset.pattern.permute.xlu0 0
    %764 = vperm.xlu0 %763, %v719
    %v765 = vpop.permute.xlu0 %764
    %766 = vset.pattern.permute.xlu0 0
    %767 = vperm.xlu0 %766, %v720
    %v768 = vpop.permute.xlu0 %767
    %vm769 = vcmp.eq.s32.totalorder %v723, %v28
    %vm770 = vcmp.eq.s32.totalorder %v726, %v28
    %vm771 = vcmp.eq.s32.totalorder %v729, %v28
    %vm772 = vcmp.eq.s32.totalorder %v732, %v28
    %vm773 = vcmp.eq.s32.totalorder %v735, %v28
    %vm774 = vcmp.eq.s32.totalorder %v738, %v28
    %vm775 = vcmp.eq.s32.totalorder %v741, %v28
    %vm776 = vcmp.eq.s32.totalorder %v744, %v28
    %vm777 = vcmp.eq.s32.totalorder %v747, %v28
    %vm778 = vcmp.eq.s32.totalorder %v750, %v28
    %vm779 = vcmp.eq.s32.totalorder %v753, %v28
    %vm780 = vcmp.eq.s32.totalorder %v756, %v28
    %vm781 = vcmp.eq.s32.totalorder %v759, %v28
    %vm782 = vcmp.eq.s32.totalorder %v762, %v28
    %vm783 = vcmp.eq.s32.totalorder %v765, %v28
    %vm784 = vcmp.eq.s32.totalorder %v768, %v28
    %v785 = vsel %vm769, 1, 0
    %v786 = vsel %vm770, 1, 0
    %v787 = vsel %vm771, 1, 0
    %v788 = vsel %vm772, 1, 0
    %v789 = vsel %vm773, 1, 0
    %v790 = vsel %vm774, 1, 0
    %v791 = vsel %vm775, 1, 0
    %v792 = vsel %vm776, 1, 0
    %v793 = vsel %vm777, 1, 0
    %v794 = vsel %vm778, 1, 0
    %v795 = vsel %vm779, 1, 0
    %v796 = vsel %vm780, 1, 0
    %v797 = vsel %vm781, 1, 0
    %v798 = vsel %vm782, 1, 0
    %v799 = vsel %vm783, 1, 0
    %v800 = vsel %vm784, 1, 0
    %v801 = vcvt.s32.f32 %v785
    %v802 = vcvt.s32.f32 %v786
    %v803 = vcvt.s32.f32 %v787
    %v804 = vcvt.s32.f32 %v788
    %v805 = vcvt.s32.f32 %v789
    %v806 = vcvt.s32.f32 %v790
    %v807 = vcvt.s32.f32 %v791
    %v808 = vcvt.s32.f32 %v792
    %v809 = vcvt.s32.f32 %v793
    %v810 = vcvt.s32.f32 %v794
    %v811 = vcvt.s32.f32 %v795
    %v812 = vcvt.s32.f32 %v796
    %v813 = vcvt.s32.f32 %v797
    %v814 = vcvt.s32.f32 %v798
    %v815 = vcvt.s32.f32 %v799
    %v816 = vcvt.s32.f32 %v800
    %817 = vmatpush.msra.mxu0 %v171
    %818 = vmatpush.msra.mxu0 %v169
    %819 = vmatpush.msra.mxu0 %v167
    %820 = vmatpush.msra.mxu0 %v165
    %821 = vmatpush.msra.mxu0 %v163
    %822 = vmatpush.msra.mxu0 %v161
    %823 = vmatpush.msra.mxu0 %v159
    %824 = vmatpush.msra.mxu0 %v157
    %825 = vmatpush.msra.mxu0 %v155
    %826 = vmatpush.msra.mxu0 %v153
    %827 = vmatpush.msra.mxu0 %v151
    %828 = vmatpush.msra.mxu0 %v149
    %829 = vmatpush.msra.mxu0 %v147
    %830 = vmatpush.msra.mxu0 %v145
    %831 = vmatpush.msra.mxu0 %v143
    %832 = vmatpush.msra.mxu0 %v141
    %833 = vmatmul.f32.gmra.mxu0 %v801
    %v834 = vpop.f32.mrf.mxu0
    %v835 = vadd.f32 0.0, %v834
    %836 = vmatmul.f32.gmra.mxu0 %v802
    %v837 = vpop.f32.mrf.mxu0
    %v838 = vadd.f32 0.0, %v837
    %839 = vmatmul.f32.gmra.mxu0 %v803
    %v840 = vpop.f32.mrf.mxu0
    %v841 = vadd.f32 0.0, %v840
    %842 = vmatmul.f32.gmra.mxu0 %v804
    %v843 = vpop.f32.mrf.mxu0
    %v844 = vadd.f32 0.0, %v843
    %845 = vmatmul.f32.gmra.mxu0 %v805
    %v846 = vpop.f32.mrf.mxu0
    %v847 = vadd.f32 0.0, %v846
    %848 = vmatmul.f32.gmra.mxu0 %v806
    %v849 = vpop.f32.mrf.mxu0
    %v850 = vadd.f32 0.0, %v849
    %851 = vmatmul.f32.gmra.mxu0 %v807
    %v852 = vpop.f32.mrf.mxu0
    %v853 = vadd.f32 0.0, %v852
    %854 = vmatmul.f32.gmra.mxu0 %v808
    %v855 = vpop.f32.mrf.mxu0
    %v856 = vadd.f32 0.0, %v855
    %857 = vmatmul.f32.gmra.mxu0 %v809
    %v858 = vpop.f32.mrf.mxu0
    %v859 = vadd.f32 0.0, %v858
    %860 = vmatmul.f32.gmra.mxu0 %v810
    %v861 = vpop.f32.mrf.mxu0
    %v862 = vadd.f32 0.0, %v861
    %863 = vmatmul.f32.gmra.mxu0 %v811
    %v864 = vpop.f32.mrf.mxu0
    %v865 = vadd.f32 0.0, %v864
    %866 = vmatmul.f32.gmra.mxu0 %v812
    %v867 = vpop.f32.mrf.mxu0
    %v868 = vadd.f32 0.0, %v867
    %869 = vmatmul.f32.gmra.mxu0 %v813
    %v870 = vpop.f32.mrf.mxu0
    %v871 = vadd.f32 0.0, %v870
    %872 = vmatmul.f32.gmra.mxu0 %v814
    %v873 = vpop.f32.mrf.mxu0
    %v874 = vadd.f32 0.0, %v873
    %875 = vmatmul.f32.gmra.mxu0 %v815
    %v876 = vpop.f32.mrf.mxu0
    %v877 = vadd.f32 0.0, %v876
    %878 = vmatmul.f32.gmra.mxu0 %v816
    %v879 = vpop.f32.mrf.mxu0
    %v880 = vadd.f32 0.0, %v879
    %881 = vdwg.mxu0
    %882 = vmatpush.msra.mxu0 %v172
    %883 = vmatpush.msra.mxu0 %v170
    %884 = vmatpush.msra.mxu0 %v168
    %885 = vmatpush.msra.mxu0 %v166
    %886 = vmatpush.msra.mxu0 %v164
    %887 = vmatpush.msra.mxu0 %v162
    %888 = vmatpush.msra.mxu0 %v160
    %889 = vmatpush.msra.mxu0 %v158
    %890 = vmatpush.msra.mxu0 %v156
    %891 = vmatpush.msra.mxu0 %v154
    %892 = vmatpush.msra.mxu0 %v152
    %893 = vmatpush.msra.mxu0 %v150
    %894 = vmatpush.msra.mxu0 %v148
    %895 = vmatpush.msra.mxu0 %v146
    %896 = vmatpush.msra.mxu0 %v144
    %897 = vmatpush.msra.mxu0 %v142
    %898 = vmatmul.f32.gmra.mxu0 %v801
    %v899 = vpop.f32.mrf.mxu0
    %v900 = vadd.f32 0.0, %v899
    %901 = vmatmul.f32.gmra.mxu0 %v802
    %v902 = vpop.f32.mrf.mxu0
    %v903 = vadd.f32 0.0, %v902
    %904 = vmatmul.f32.gmra.mxu0 %v803
    %v905 = vpop.f32.mrf.mxu0
    %v906 = vadd.f32 0.0, %v905
    %907 = vmatmul.f32.gmra.mxu0 %v804
    %v908 = vpop.f32.mrf.mxu0
    %v909 = vadd.f32 0.0, %v908
    %910 = vmatmul.f32.gmra.mxu0 %v805
    %v911 = vpop.f32.mrf.mxu0
    %v912 = vadd.f32 0.0, %v911
    %913 = vmatmul.f32.gmra.mxu0 %v806
    %v914 = vpop.f32.mrf.mxu0
    %v915 = vadd.f32 0.0, %v914
    %916 = vmatmul.f32.gmra.mxu0 %v807
    %v917 = vpop.f32.mrf.mxu0
    %v918 = vadd.f32 0.0, %v917
    %919 = vmatmul.f32.gmra.mxu0 %v808
    %v920 = vpop.f32.mrf.mxu0
    %v921 = vadd.f32 0.0, %v920
    %922 = vmatmul.f32.gmra.mxu0 %v809
    %v923 = vpop.f32.mrf.mxu0
    %v924 = vadd.f32 0.0, %v923
    %925 = vmatmul.f32.gmra.mxu0 %v810
    %v926 = vpop.f32.mrf.mxu0
    %v927 = vadd.f32 0.0, %v926
    %928 = vmatmul.f32.gmra.mxu0 %v811
    %v929 = vpop.f32.mrf.mxu0
    %v930 = vadd.f32 0.0, %v929
    %931 = vmatmul.f32.gmra.mxu0 %v812
    %v932 = vpop.f32.mrf.mxu0
    %v933 = vadd.f32 0.0, %v932
    %934 = vmatmul.f32.gmra.mxu0 %v813
    %v935 = vpop.f32.mrf.mxu0
    %v936 = vadd.f32 0.0, %v935
    %937 = vmatmul.f32.gmra.mxu0 %v814
    %v938 = vpop.f32.mrf.mxu0
    %v939 = vadd.f32 0.0, %v938
    %940 = vmatmul.f32.gmra.mxu0 %v815
    %v941 = vpop.f32.mrf.mxu0
    %v942 = vadd.f32 0.0, %v941
    %943 = vmatmul.f32.gmra.mxu0 %v816
    %v944 = vpop.f32.mrf.mxu0
    %v945 = vadd.f32 0.0, %v944
    %946 = vdwg.mxu0
    %v947 = vld [vmem:[%s3] sm:$0xff]
    %v948 = vld [vmem:[%s3 + $0x8] sm:$0xff]
    %v949 = vld [vmem:[%s3 + $0x10] sm:$0xff]
    %v950 = vld [vmem:[%s3 + $0x18] sm:$0xff]
    %v951 = vld [vmem:[%s3 + $0x20] sm:$0xff]
    %v952 = vld [vmem:[%s3 + $0x28] sm:$0xff]
    %v953 = vld [vmem:[%s3 + $0x30] sm:$0xff]
    %v954 = vld [vmem:[%s3 + $0x38] sm:$0xff]
    %v955 = vld [vmem:[%s3 + $0x40] sm:$0xff]
    %v956 = vld [vmem:[%s3 + $0x48] sm:$0xff]
    %v957 = vld [vmem:[%s3 + $0x50] sm:$0xff]
    %v958 = vld [vmem:[%s3 + $0x58] sm:$0xff]
    %v959 = vld [vmem:[%s3 + $0x60] sm:$0xff]
    %v960 = vld [vmem:[%s3 + $0x68] sm:$0xff]
    %v961 = vld [vmem:[%s3 + $0x70] sm:$0xff]
    %v962 = vld [vmem:[%s3 + $0x78] sm:$0xff]
    %963 = vset.pattern.permute.xlu0 0
    %964 = vperm.xlu0 %963, %v947
    %v965 = vpop.permute.xlu0 %964
    %966 = vset.pattern.permute.xlu0 0
    %967 = vperm.xlu0 %966, %v948
    %v968 = vpop.permute.xlu0 %967
    %969 = vset.pattern.permute.xlu0 0
    %970 = vperm.xlu0 %969, %v949
    %v971 = vpop.permute.xlu0 %970
    %972 = vset.pattern.permute.xlu0 0
    %973 = vperm.xlu0 %972, %v950
    %v974 = vpop.permute.xlu0 %973
    %975 = vset.pattern.permute.xlu0 0
    %976 = vperm.xlu0 %975, %v951
    %v977 = vpop.permute.xlu0 %976
    %978 = vset.pattern.permute.xlu0 0
    %979 = vperm.xlu0 %978, %v952
    %v980 = vpop.permute.xlu0 %979
    %981 = vset.pattern.permute.xlu0 0
    %982 = vperm.xlu0 %981, %v953
    %v983 = vpop.permute.xlu0 %982
    %984 = vset.pattern.permute.xlu0 0
    %985 = vperm.xlu0 %984, %v954
    %v986 = vpop.permute.xlu0 %985
    %987 = vset.pattern.permute.xlu0 0
    %988 = vperm.xlu0 %987, %v955
    %v989 = vpop.permute.xlu0 %988
    %990 = vset.pattern.permute.xlu0 0
    %991 = vperm.xlu0 %990, %v956
    %v992 = vpop.permute.xlu0 %991
    %993 = vset.pattern.permute.xlu0 0
    %994 = vperm.xlu0 %993, %v957
    %v995 = vpop.permute.xlu0 %994
    %996 = vset.pattern.permute.xlu0 0
    %997 = vperm.xlu0 %996, %v958
    %v998 = vpop.permute.xlu0 %997
    %999 = vset.pattern.permute.xlu0 0
    %1000 = vperm.xlu0 %999, %v959
    %v1001 = vpop.permute.xlu0 %1000
    %1002 = vset.pattern.permute.xlu0 0
    %1003 = vperm.xlu0 %1002, %v960
    %v1004 = vpop.permute.xlu0 %1003
    %1005 = vset.pattern.permute.xlu0 0
    %1006 = vperm.xlu0 %1005, %v961
    %v1007 = vpop.permute.xlu0 %1006
    %1008 = vset.pattern.permute.xlu0 0
    %1009 = vperm.xlu0 %1008, %v962
    %v1010 = vpop.permute.xlu0 %1009
    %vm1011 = vcmp.eq.s32.totalorder %v965, %v28
    %vm1012 = vcmp.eq.s32.totalorder %v968, %v28
    %vm1013 = vcmp.eq.s32.totalorder %v971, %v28
    %vm1014 = vcmp.eq.s32.totalorder %v974, %v28
    %vm1015 = vcmp.eq.s32.totalorder %v977, %v28
    %vm1016 = vcmp.eq.s32.totalorder %v980, %v28
    %vm1017 = vcmp.eq.s32.totalorder %v983, %v28
    %vm1018 = vcmp.eq.s32.totalorder %v986, %v28
    %vm1019 = vcmp.eq.s32.totalorder %v989, %v28
    %vm1020 = vcmp.eq.s32.totalorder %v992, %v28
    %vm1021 = vcmp.eq.s32.totalorder %v995, %v28
    %vm1022 = vcmp.eq.s32.totalorder %v998, %v28
    %vm1023 = vcmp.eq.s32.totalorder %v1001, %v28
    %vm1024 = vcmp.eq.s32.totalorder %v1004, %v28
    %vm1025 = vcmp.eq.s32.totalorder %v1007, %v28
    %vm1026 = vcmp.eq.s32.totalorder %v1010, %v28
    %v1027 = vsel %vm1011, 1, 0
    %v1028 = vsel %vm1012, 1, 0
    %v1029 = vsel %vm1013, 1, 0
    %v1030 = vsel %vm1014, 1, 0
    %v1031 = vsel %vm1015, 1, 0
    %v1032 = vsel %vm1016, 1, 0
    %v1033 = vsel %vm1017, 1, 0
    %v1034 = vsel %vm1018, 1, 0
    %v1035 = vsel %vm1019, 1, 0
    %v1036 = vsel %vm1020, 1, 0
    %v1037 = vsel %vm1021, 1, 0
    %v1038 = vsel %vm1022, 1, 0
    %v1039 = vsel %vm1023, 1, 0
    %v1040 = vsel %vm1024, 1, 0
    %v1041 = vsel %vm1025, 1, 0
    %v1042 = vsel %vm1026, 1, 0
    %v1043 = vcvt.s32.f32 %v1027
    %v1044 = vcvt.s32.f32 %v1028
    %v1045 = vcvt.s32.f32 %v1029
    %v1046 = vcvt.s32.f32 %v1030
    %v1047 = vcvt.s32.f32 %v1031
    %v1048 = vcvt.s32.f32 %v1032
    %v1049 = vcvt.s32.f32 %v1033
    %v1050 = vcvt.s32.f32 %v1034
    %v1051 = vcvt.s32.f32 %v1035
    %v1052 = vcvt.s32.f32 %v1036
    %v1053 = vcvt.s32.f32 %v1037
    %v1054 = vcvt.s32.f32 %v1038
    %v1055 = vcvt.s32.f32 %v1039
    %v1056 = vcvt.s32.f32 %v1040
    %v1057 = vcvt.s32.f32 %v1041
    %v1058 = vcvt.s32.f32 %v1042
    %1059 = vmatpush.msra.mxu0 %v445
    %1060 = vmatpush.msra.mxu0 %v443
    %1061 = vmatpush.msra.mxu0 %v441
    %1062 = vmatpush.msra.mxu0 %v439
    %1063 = vmatpush.msra.mxu0 %v437
    %1064 = vmatpush.msra.mxu0 %v435
    %1065 = vmatpush.msra.mxu0 %v433
    %1066 = vmatpush.msra.mxu0 %v431
    %1067 = vmatpush.msra.mxu0 %v429
    %1068 = vmatpush.msra.mxu0 %v427
    %1069 = vmatpush.msra.mxu0 %v425
    %1070 = vmatpush.msra.mxu0 %v423
    %1071 = vmatpush.msra.mxu0 %v421
    %1072 = vmatpush.msra.mxu0 %v419
    %1073 = vmatpush.msra.mxu0 %v417
    %1074 = vmatpush.msra.mxu0 %v415
    %1075 = vmatmul.f32.gmra.mxu0 %v1043
    %v1076 = vpop.f32.mrf.mxu0
    %v1077 = vadd.f32 0.0, %v1076
    %1078 = vmatmul.f32.gmra.mxu0 %v1044
    %v1079 = vpop.f32.mrf.mxu0
    %v1080 = vadd.f32 0.0, %v1079
    %1081 = vmatmul.f32.gmra.mxu0 %v1045
    %v1082 = vpop.f32.mrf.mxu0
    %v1083 = vadd.f32 0.0, %v1082
    %1084 = vmatmul.f32.gmra.mxu0 %v1046
    %v1085 = vpop.f32.mrf.mxu0
    %v1086 = vadd.f32 0.0, %v1085
    %1087 = vmatmul.f32.gmra.mxu0 %v1047
    %v1088 = vpop.f32.mrf.mxu0
    %v1089 = vadd.f32 0.0, %v1088
    %1090 = vmatmul.f32.gmra.mxu0 %v1048
    %v1091 = vpop.f32.mrf.mxu0
    %v1092 = vadd.f32 0.0, %v1091
    %1093 = vmatmul.f32.gmra.mxu0 %v1049
    %v1094 = vpop.f32.mrf.mxu0
    %v1095 = vadd.f32 0.0, %v1094
    %1096 = vmatmul.f32.gmra.mxu0 %v1050
    %v1097 = vpop.f32.mrf.mxu0
    %v1098 = vadd.f32 0.0, %v1097
    %1099 = vmatmul.f32.gmra.mxu0 %v1051
    %v1100 = vpop.f32.mrf.mxu0
    %v1101 = vadd.f32 0.0, %v1100
    %1102 = vmatmul.f32.gmra.mxu0 %v1052
    %v1103 = vpop.f32.mrf.mxu0
    %v1104 = vadd.f32 0.0, %v1103
    %1105 = vmatmul.f32.gmra.mxu0 %v1053
    %v1106 = vpop.f32.mrf.mxu0
    %v1107 = vadd.f32 0.0, %v1106
    %1108 = vmatmul.f32.gmra.mxu0 %v1054
    %v1109 = vpop.f32.mrf.mxu0
    %v1110 = vadd.f32 0.0, %v1109
    %1111 = vmatmul.f32.gmra.mxu0 %v1055
    %v1112 = vpop.f32.mrf.mxu0
    %v1113 = vadd.f32 0.0, %v1112
    %1114 = vmatmul.f32.gmra.mxu0 %v1056
    %v1115 = vpop.f32.mrf.mxu0
    %v1116 = vadd.f32 0.0, %v1115
    %1117 = vmatmul.f32.gmra.mxu0 %v1057
    %v1118 = vpop.f32.mrf.mxu0
    %v1119 = vadd.f32 0.0, %v1118
    %1120 = vmatmul.f32.gmra.mxu0 %v1058
    %v1121 = vpop.f32.mrf.mxu0
    %v1122 = vadd.f32 0.0, %v1121
    %1123 = vdwg.mxu0
    %1124 = vmatpush.msra.mxu0 %v446
    %1125 = vmatpush.msra.mxu0 %v444
    %1126 = vmatpush.msra.mxu0 %v442
    %1127 = vmatpush.msra.mxu0 %v440
    %1128 = vmatpush.msra.mxu0 %v438
    %1129 = vmatpush.msra.mxu0 %v436
    %1130 = vmatpush.msra.mxu0 %v434
    %1131 = vmatpush.msra.mxu0 %v432
    %1132 = vmatpush.msra.mxu0 %v430
    %1133 = vmatpush.msra.mxu0 %v428
    %1134 = vmatpush.msra.mxu0 %v426
    %1135 = vmatpush.msra.mxu0 %v424
    %1136 = vmatpush.msra.mxu0 %v422
    %1137 = vmatpush.msra.mxu0 %v420
    %1138 = vmatpush.msra.mxu0 %v418
    %1139 = vmatpush.msra.mxu0 %v416
    %1140 = vmatmul.f32.gmra.mxu0 %v1043
    %v1141 = vpop.f32.mrf.mxu0
    %v1142 = vadd.f32 0.0, %v1141
    %1143 = vmatmul.f32.gmra.mxu0 %v1044
    %v1144 = vpop.f32.mrf.mxu0
    %v1145 = vadd.f32 0.0, %v1144
    %1146 = vmatmul.f32.gmra.mxu0 %v1045
    %v1147 = vpop.f32.mrf.mxu0
    %v1148 = vadd.f32 0.0, %v1147
    %1149 = vmatmul.f32.gmra.mxu0 %v1046
    %v1150 = vpop.f32.mrf.mxu0
    %v1151 = vadd.f32 0.0, %v1150
    %1152 = vmatmul.f32.gmra.mxu0 %v1047
    %v1153 = vpop.f32.mrf.mxu0
    %v1154 = vadd.f32 0.0, %v1153
    %1155 = vmatmul.f32.gmra.mxu0 %v1048
    %v1156 = vpop.f32.mrf.mxu0
    %v1157 = vadd.f32 0.0, %v1156
    %1158 = vmatmul.f32.gmra.mxu0 %v1049
    %v1159 = vpop.f32.mrf.mxu0
    %v1160 = vadd.f32 0.0, %v1159
    %1161 = vmatmul.f32.gmra.mxu0 %v1050
    %v1162 = vpop.f32.mrf.mxu0
    %v1163 = vadd.f32 0.0, %v1162
    %1164 = vmatmul.f32.gmra.mxu0 %v1051
    %v1165 = vpop.f32.mrf.mxu0
    %v1166 = vadd.f32 0.0, %v1165
    %1167 = vmatmul.f32.gmra.mxu0 %v1052
    %v1168 = vpop.f32.mrf.mxu0
    %v1169 = vadd.f32 0.0, %v1168
    %1170 = vmatmul.f32.gmra.mxu0 %v1053
    %v1171 = vpop.f32.mrf.mxu0
    %v1172 = vadd.f32 0.0, %v1171
    %1173 = vmatmul.f32.gmra.mxu0 %v1054
    %v1174 = vpop.f32.mrf.mxu0
    %v1175 = vadd.f32 0.0, %v1174
    %1176 = vmatmul.f32.gmra.mxu0 %v1055
    %v1177 = vpop.f32.mrf.mxu0
    %v1178 = vadd.f32 0.0, %v1177
    %1179 = vmatmul.f32.gmra.mxu0 %v1056
    %v1180 = vpop.f32.mrf.mxu0
    %v1181 = vadd.f32 0.0, %v1180
    %1182 = vmatmul.f32.gmra.mxu0 %v1057
    %v1183 = vpop.f32.mrf.mxu0
    %v1184 = vadd.f32 0.0, %v1183
    %1185 = vmatmul.f32.gmra.mxu0 %v1058
    %v1186 = vpop.f32.mrf.mxu0
    %v1187 = vadd.f32 0.0, %v1186
    %1188 = vdwg.mxu0
    %v1189 = vsub.f32 %v835, %v1077
    %v1190 = vsub.f32 %v900, %v1142
    %v1191 = vsub.f32 %v838, %v1080
    %v1192 = vsub.f32 %v903, %v1145
    %v1193 = vsub.f32 %v841, %v1083
    %v1194 = vsub.f32 %v906, %v1148
    %v1195 = vsub.f32 %v844, %v1086
    %v1196 = vsub.f32 %v909, %v1151
    %v1197 = vsub.f32 %v847, %v1089
    %v1198 = vsub.f32 %v912, %v1154
    %v1199 = vsub.f32 %v850, %v1092
    %v1200 = vsub.f32 %v915, %v1157
    %v1201 = vsub.f32 %v853, %v1095
    %v1202 = vsub.f32 %v918, %v1160
    %v1203 = vsub.f32 %v856, %v1098
    %v1204 = vsub.f32 %v921, %v1163
    %v1205 = vsub.f32 %v859, %v1101
    %v1206 = vsub.f32 %v924, %v1166
    %v1207 = vsub.f32 %v862, %v1104
    %v1208 = vsub.f32 %v927, %v1169
    %v1209 = vsub.f32 %v865, %v1107
    %v1210 = vsub.f32 %v930, %v1172
    %v1211 = vsub.f32 %v868, %v1110
    %v1212 = vsub.f32 %v933, %v1175
    %v1213 = vsub.f32 %v871, %v1113
    %v1214 = vsub.f32 %v936, %v1178
    %v1215 = vsub.f32 %v874, %v1116
    %v1216 = vsub.f32 %v939, %v1181
    %v1217 = vsub.f32 %v877, %v1119
    %v1218 = vsub.f32 %v942, %v1184
    %v1219 = vsub.f32 %v880, %v1122
    %v1220 = vsub.f32 %v945, %v1187
    %v1221 = vmul.f32 %v1189, %v1189
    %v1222 = vmul.f32 %v1190, %v1190
    %v1223 = vmul.f32 %v1191, %v1191
    %v1224 = vmul.f32 %v1192, %v1192
    %v1225 = vmul.f32 %v1193, %v1193
    %v1226 = vmul.f32 %v1194, %v1194
    %v1227 = vmul.f32 %v1195, %v1195
    %v1228 = vmul.f32 %v1196, %v1196
    %v1229 = vmul.f32 %v1197, %v1197
    %v1230 = vmul.f32 %v1198, %v1198
    %v1231 = vmul.f32 %v1199, %v1199
    %v1232 = vmul.f32 %v1200, %v1200
    %v1233 = vmul.f32 %v1201, %v1201
    %v1234 = vmul.f32 %v1202, %v1202
    %v1235 = vmul.f32 %v1203, %v1203
    %v1236 = vmul.f32 %v1204, %v1204
    %v1237 = vmul.f32 %v1205, %v1205
    %v1238 = vmul.f32 %v1206, %v1206
    %v1239 = vmul.f32 %v1207, %v1207
    %v1240 = vmul.f32 %v1208, %v1208
    %v1241 = vmul.f32 %v1209, %v1209
    %v1242 = vmul.f32 %v1210, %v1210
    %v1243 = vmul.f32 %v1211, %v1211
    %v1244 = vmul.f32 %v1212, %v1212
    %v1245 = vmul.f32 %v1213, %v1213
    %v1246 = vmul.f32 %v1214, %v1214
    %v1247 = vmul.f32 %v1215, %v1215
    %v1248 = vmul.f32 %v1216, %v1216
    %v1249 = vmul.f32 %v1217, %v1217
    %v1250 = vmul.f32 %v1218, %v1218
    %v1251 = vmul.f32 %v1219, %v1219
    %v1252 = vmul.f32 %v1220, %v1220
    %v1253 = vadd.f32 %v1221, %v1222
    %1254 = vadd.xlane.f32.xlu0 %v1253
    %v1255 = vpop.xlane.xlu0 %1254
    %v1256 = vadd.f32 %v1223, %v1224
    %1257 = vadd.xlane.f32.xlu0 %v1256
    %v1258 = vpop.xlane.xlu0 %1257
    %v1259 = vadd.f32 %v1225, %v1226
    %1260 = vadd.xlane.f32.xlu0 %v1259
    %v1261 = vpop.xlane.xlu0 %1260
    %v1262 = vadd.f32 %v1227, %v1228
    %1263 = vadd.xlane.f32.xlu0 %v1262
    %v1264 = vpop.xlane.xlu0 %1263
    %v1265 = vadd.f32 %v1229, %v1230
    %1266 = vadd.xlane.f32.xlu0 %v1265
    %v1267 = vpop.xlane.xlu0 %1266
    %v1268 = vadd.f32 %v1231, %v1232
    %1269 = vadd.xlane.f32.xlu0 %v1268
    %v1270 = vpop.xlane.xlu0 %1269
    %v1271 = vadd.f32 %v1233, %v1234
    %1272 = vadd.xlane.f32.xlu0 %v1271
    %v1273 = vpop.xlane.xlu0 %1272
    %v1274 = vadd.f32 %v1235, %v1236
    %1275 = vadd.xlane.f32.xlu0 %v1274
    %v1276 = vpop.xlane.xlu0 %1275
    %v1277 = vadd.f32 %v1237, %v1238
    %1278 = vadd.xlane.f32.xlu0 %v1277
    %v1279 = vpop.xlane.xlu0 %1278
    %v1280 = vadd.f32 %v1239, %v1240
    %1281 = vadd.xlane.f32.xlu0 %v1280
    %v1282 = vpop.xlane.xlu0 %1281
    %v1283 = vadd.f32 %v1241, %v1242
    %1284 = vadd.xlane.f32.xlu0 %v1283
    %v1285 = vpop.xlane.xlu0 %1284
    %v1286 = vadd.f32 %v1243, %v1244
    %1287 = vadd.xlane.f32.xlu0 %v1286
    %v1288 = vpop.xlane.xlu0 %1287
    %v1289 = vadd.f32 %v1245, %v1246
    %1290 = vadd.xlane.f32.xlu0 %v1289
    %v1291 = vpop.xlane.xlu0 %1290
    %v1292 = vadd.f32 %v1247, %v1248
    %1293 = vadd.xlane.f32.xlu0 %v1292
    %v1294 = vpop.xlane.xlu0 %1293
    %v1295 = vadd.f32 %v1249, %v1250
    %1296 = vadd.xlane.f32.xlu0 %v1295
    %v1297 = vpop.xlane.xlu0 %1296
    %v1298 = vadd.f32 %v1251, %v1252
    %1299 = vadd.xlane.f32.xlu0 %v1298
    %v1300 = vpop.xlane.xlu0 %1299
    %v1301 = vld [vmem:[%s4] sm:$0xff]
    %v1302 = vld [vmem:[%s4 + $0x8] sm:$0xff]
    %v1303 = vld [vmem:[%s4 + $0x10] sm:$0xff]
    %v1304 = vld [vmem:[%s4 + $0x18] sm:$0xff]
    %v1305 = vld [vmem:[%s4 + $0x20] sm:$0xff]
    %v1306 = vld [vmem:[%s4 + $0x28] sm:$0xff]
    %v1307 = vld [vmem:[%s4 + $0x30] sm:$0xff]
    %v1308 = vld [vmem:[%s4 + $0x38] sm:$0xff]
    %v1309 = vld [vmem:[%s4 + $0x40] sm:$0xff]
    %v1310 = vld [vmem:[%s4 + $0x48] sm:$0xff]
    %v1311 = vld [vmem:[%s4 + $0x50] sm:$0xff]
    %v1312 = vld [vmem:[%s4 + $0x58] sm:$0xff]
    %v1313 = vld [vmem:[%s4 + $0x60] sm:$0xff]
    %v1314 = vld [vmem:[%s4 + $0x68] sm:$0xff]
    %v1315 = vld [vmem:[%s4 + $0x70] sm:$0xff]
    %v1316 = vld [vmem:[%s4 + $0x78] sm:$0xff]
    %v1317 = vmul.f32 %v1255, %v1301
    %v1318 = vmul.f32 %v1258, %v1302
    %v1319 = vmul.f32 %v1261, %v1303
    %v1320 = vmul.f32 %v1264, %v1304
    %v1321 = vmul.f32 %v1267, %v1305
    %v1322 = vmul.f32 %v1270, %v1306
    %v1323 = vmul.f32 %v1273, %v1307
    %v1324 = vmul.f32 %v1276, %v1308
    %v1325 = vmul.f32 %v1279, %v1309
    %v1326 = vmul.f32 %v1282, %v1310
    %v1327 = vmul.f32 %v1285, %v1311
    %v1328 = vmul.f32 %v1288, %v1312
    %v1329 = vmul.f32 %v1291, %v1313
    %v1330 = vmul.f32 %v1294, %v1314
    %v1331 = vmul.f32 %v1297, %v1315
    %v1332 = vmul.f32 %v1300, %v1316
    %v1333 = vsub.f32 5.0, %v1255
    %v1334 = vsub.f32 5.0, %v1258
    %v1335 = vsub.f32 5.0, %v1261
    %v1336 = vsub.f32 5.0, %v1264
    %v1337 = vsub.f32 5.0, %v1267
    %v1338 = vsub.f32 5.0, %v1270
    %v1339 = vsub.f32 5.0, %v1273
    %v1340 = vsub.f32 5.0, %v1276
    %v1341 = vsub.f32 5.0, %v1279
    %v1342 = vsub.f32 5.0, %v1282
    %v1343 = vsub.f32 5.0, %v1285
    %v1344 = vsub.f32 5.0, %v1288
    %v1345 = vsub.f32 5.0, %v1291
    %v1346 = vsub.f32 5.0, %v1294
    %v1347 = vsub.f32 5.0, %v1297
    %v1348 = vsub.f32 5.0, %v1300
    %v1349 = vmax.f32 %v1333, 0.0
    %v1350 = vmax.f32 %v1334, 0.0
    %v1351 = vmax.f32 %v1335, 0.0
    %v1352 = vmax.f32 %v1336, 0.0
    %v1353 = vmax.f32 %v1337, 0.0
    %v1354 = vmax.f32 %v1338, 0.0
    %v1355 = vmax.f32 %v1339, 0.0
    %v1356 = vmax.f32 %v1340, 0.0
    %v1357 = vmax.f32 %v1341, 0.0
    %v1358 = vmax.f32 %v1342, 0.0
    %v1359 = vmax.f32 %v1343, 0.0
    %v1360 = vmax.f32 %v1344, 0.0
    %v1361 = vmax.f32 %v1345, 0.0
    %v1362 = vmax.f32 %v1346, 0.0
    %v1363 = vmax.f32 %v1347, 0.0
    %v1364 = vmax.f32 %v1348, 0.0
    %v1365 = vsub.f32 1.0, %v1301
    %v1366 = vsub.f32 1.0, %v1302
    %v1367 = vsub.f32 1.0, %v1303
    %v1368 = vsub.f32 1.0, %v1304
    %v1369 = vsub.f32 1.0, %v1305
    %v1370 = vsub.f32 1.0, %v1306
    %v1371 = vsub.f32 1.0, %v1307
    %v1372 = vsub.f32 1.0, %v1308
    %v1373 = vsub.f32 1.0, %v1309
    %v1374 = vsub.f32 1.0, %v1310
    %v1375 = vsub.f32 1.0, %v1311
    %v1376 = vsub.f32 1.0, %v1312
    %v1377 = vsub.f32 1.0, %v1313
    %v1378 = vsub.f32 1.0, %v1314
    %v1379 = vsub.f32 1.0, %v1315
    %v1380 = vsub.f32 1.0, %v1316
    %v1381 = vmul.f32 %v1349, %v1365
    %v1382 = vmul.f32 %v1350, %v1366
    %v1383 = vmul.f32 %v1351, %v1367
    %v1384 = vmul.f32 %v1352, %v1368
    %v1385 = vmul.f32 %v1353, %v1369
    %v1386 = vmul.f32 %v1354, %v1370
    %v1387 = vmul.f32 %v1355, %v1371
    %v1388 = vmul.f32 %v1356, %v1372
    %v1389 = vmul.f32 %v1357, %v1373
    %v1390 = vmul.f32 %v1358, %v1374
    %v1391 = vmul.f32 %v1359, %v1375
    %v1392 = vmul.f32 %v1360, %v1376
    %v1393 = vmul.f32 %v1361, %v1377
    %v1394 = vmul.f32 %v1362, %v1378
    %v1395 = vmul.f32 %v1363, %v1379
    %v1396 = vmul.f32 %v1364, %v1380
    %v1397 = vadd.f32 %v1317, %v1381
    %v1398 = vadd.f32 %v1318, %v1382
    %v1399 = vadd.f32 %v1319, %v1383
    %v1400 = vadd.f32 %v1320, %v1384
    %v1401 = vadd.f32 %v1321, %v1385
    %v1402 = vadd.f32 %v1322, %v1386
    %v1403 = vadd.f32 %v1323, %v1387
    %v1404 = vadd.f32 %v1324, %v1388
    %v1405 = vadd.f32 %v1325, %v1389
    %v1406 = vadd.f32 %v1326, %v1390
    %v1407 = vadd.f32 %v1327, %v1391
    %v1408 = vadd.f32 %v1328, %v1392
    %v1409 = vadd.f32 %v1329, %v1393
    %v1410 = vadd.f32 %v1330, %v1394
    %v1411 = vadd.f32 %v1331, %v1395
    %v1412 = vadd.f32 %v1332, %v1396
    %v1413 = vadd.f32 %v1397, 0.0
    %v1414 = vadd.f32 %v1398, 0.0
    %v1415 = vadd.f32 %v1399, 0.0
    %v1416 = vadd.f32 %v1400, 0.0
    %v1417 = vadd.f32 %v1401, 0.0
    %v1418 = vadd.f32 %v1402, 0.0
    %v1419 = vadd.f32 %v1403, 0.0
    %v1420 = vadd.f32 %v1404, 0.0
    %v1421 = vadd.f32 %v1405, 0.0
    %v1422 = vadd.f32 %v1406, 0.0
    %v1423 = vadd.f32 %v1407, 0.0
    %v1424 = vadd.f32 %v1408, 0.0
    %v1425 = vadd.f32 %v1409, 0.0
    %v1426 = vadd.f32 %v1410, 0.0
    %v1427 = vadd.f32 %v1411, 0.0
    %v1428 = vadd.f32 %v1412, 0.0
    %vm1429 = vcmask 7168
    %v1430 = vsel %vm1429, %v689, 0.0
    %v1431 = vsel %vm1429, %v690, 0.0
    %v1432 = vadd.f32 %v1430, %v1431
    %v1433 = vsel %vm1429, %v691, 0.0
    %v1434 = vadd.f32 %v1432, %v1433
    %v1435 = vsel %vm1429, %v692, 0.0
    %v1436 = vadd.f32 %v1434, %v1435
    %v1437 = vsel %vm1429, %v693, 0.0
    %v1438 = vadd.f32 %v1436, %v1437
    %v1439 = vsel %vm1429, %v694, 0.0
    %v1440 = vadd.f32 %v1438, %v1439
    %v1441 = vsel %vm1429, %v695, 0.0
    %v1442 = vadd.f32 %v1440, %v1441
    %v1443 = vsel %vm1429, %v696, 0.0
    %v1444 = vadd.f32 %v1442, %v1443
    %v1445 = vsel %vm1429, %v697, 0.0
    %v1446 = vadd.f32 %v1444, %v1445
    %v1447 = vsel %vm1429, %v698, 0.0
    %v1448 = vadd.f32 %v1446, %v1447
    %v1449 = vsel %vm1429, %v699, 0.0
    %v1450 = vadd.f32 %v1448, %v1449
    %v1451 = vsel %vm1429, %v700, 0.0
    %v1452 = vadd.f32 %v1450, %v1451
    %v1453 = vsel %vm1429, %v701, 0.0
    %v1454 = vadd.f32 %v1452, %v1453
    %v1455 = vsel %vm1429, %v702, 0.0
    %v1456 = vadd.f32 %v1454, %v1455
    %v1457 = vsel %vm1429, %v703, 0.0
    %v1458 = vadd.f32 %v1456, %v1457
    %v1459 = vsel %vm1429, %v704, 0.0
    %v1460 = vadd.f32 %v1458, %v1459
    %1461 = vadd.xlane.f32.xlu0 %v1460
    %v1462 = vpop.xlane.xlu0 %1461
    %v1463 = vrot.slane %v1462, 4
    %v1464 = vadd.f32 %v1462, %v1463
    %v1465 = vrot.slane %v1464, 2
    %v1466 = vadd.f32 %v1464, %v1465
    %v1467 = vrot.slane %v1466, 1
    %v1468 = vadd.f32 %v1466, %v1467
    %s1469 = vtos %v1468
    %s1470 = smul.f32 %s1469, 0.083333336
    %v1471 = vsel %vm1429, %v1413, 0.0
    %v1472 = vsel %vm1429, %v1414, 0.0
    %v1473 = vadd.f32 %v1471, %v1472
    %v1474 = vsel %vm1429, %v1415, 0.0
    %v1475 = vadd.f32 %v1473, %v1474
    %v1476 = vsel %vm1429, %v1416, 0.0
    %v1477 = vadd.f32 %v1475, %v1476
    %v1478 = vsel %vm1429, %v1417, 0.0
    %v1479 = vadd.f32 %v1477, %v1478
    %v1480 = vsel %vm1429, %v1418, 0.0
    %v1481 = vadd.f32 %v1479, %v1480
    %v1482 = vsel %vm1429, %v1419, 0.0
    %v1483 = vadd.f32 %v1481, %v1482
    %v1484 = vsel %vm1429, %v1420, 0.0
    %v1485 = vadd.f32 %v1483, %v1484
    %v1486 = vsel %vm1429, %v1421, 0.0
    %v1487 = vadd.f32 %v1485, %v1486
    %v1488 = vsel %vm1429, %v1422, 0.0
    %v1489 = vadd.f32 %v1487, %v1488
    %v1490 = vsel %vm1429, %v1423, 0.0
    %v1491 = vadd.f32 %v1489, %v1490
    %v1492 = vsel %vm1429, %v1424, 0.0
    %v1493 = vadd.f32 %v1491, %v1492
    %v1494 = vsel %vm1429, %v1425, 0.0
    %v1495 = vadd.f32 %v1493, %v1494
    %v1496 = vsel %vm1429, %v1426, 0.0
    %v1497 = vadd.f32 %v1495, %v1496
    %v1498 = vsel %vm1429, %v1427, 0.0
    %v1499 = vadd.f32 %v1497, %v1498
    %v1500 = vsel %vm1429, %v1428, 0.0
    %v1501 = vadd.f32 %v1499, %v1500
    %1502 = vadd.xlane.f32.xlu0 %v1501
    %v1503 = vpop.xlane.xlu0 %1502
    %v1504 = vrot.slane %v1503, 4
    %v1505 = vadd.f32 %v1503, %v1504
    %v1506 = vrot.slane %v1505, 2
    %v1507 = vadd.f32 %v1505, %v1506
    %v1508 = vrot.slane %v1507, 1
    %v1509 = vadd.f32 %v1507, %v1508
    %s1510 = vtos %v1509
    %s1511 = smul.f32 %s1510, 0.05
    %s1512 = sadd.f32 %s1470, %s1511
    %s1513 = scalar_lea.smem [#allocation2], 0
    %1514 = sst [smem:[%s1513]] %s1512
    // Predicated region
    $region30: #{tpu_custom_call.1} parent=1 // pred_check
      _
    $region31: #{tpu_custom_call.1} parent=1 // pred_check_branch
      %1516 = sbr.rel (0) target = $region33
    $region32: #{tpu_custom_call.1} parent=1 // pred_region
      %1518 = vsyncadd [#allocation3], 0
      %s1520 = sshll.u32 %s7, 4
      %s1521 = int_to_ptr.hbm [resolvable:$true] %s1520
      %1523 = dma.smem_to_hbm [#allocation2], 16, %s1521, [#allocation3]
    $region33: #{tpu_custom_call.1} parent=1 // pred_fallthru
      _
    // Predicated region
    $region34: #{tpu_custom_call.1} parent=1 // pred_check
      _
    $region35: #{tpu_custom_call.1} parent=1 // pred_check_branch
      %1525 = sbr.rel (0) target = $region37
    $region36: #{tpu_custom_call.1} parent=1 // pred_region
      %1527 = dma.done [#allocation3], 16
    $region37: #{tpu_custom_call.1} parent=1 // pred_fallthru
      _
    %1528 = sfence
    %1529 = vsyncpa [#allocation3], 1

</llo_original>
